<compile_context>
chip_gen: v7x
topology: tpu7x:2x2x1
jax: 0.10.0
libtpu: 0.0.40
codegen_flags: <defaults>
</compile_context>

<pallas_src>
import functools

import jax
import jax.numpy as jnp
from jax.experimental import pallas as pl
from jax.experimental.pallas import tpu as pltpu

BN_EPS = 1e-5
LEAKY_SLOPE = 0.1


def _round_up(v, m):
    return ((v + m - 1) // m) * m


def _vmem_limit_bytes(usage_bytes):
    # computed double-buffered usage + headroom, capped so it is safe on v7x (64 MiB VMEM)
    return int(min(max(usage_bytes + (8 << 20), 32 << 20), 48 << 20))


# ---------------------------------------------------------------------------
# Pass 1: tiled conv matmul + per-channel sum / sum-of-squares accumulation
# ---------------------------------------------------------------------------
def conv_stats_kernel(p_ref, w_ref, conv_ref, stats_ref):
    # p_ref:     [TILE_M, K_pad]   bf16 im2col patches (zero-padded rows/cols)
    # w_ref:     [K_pad, C_pad]    bf16 conv weight (resident across the grid)
    # conv_ref:  [TILE_M, C_pad]   f32 conv output tile
    # stats_ref: [8, C_pad]        f32 accumulator (row 0 = sum, row 1 = sum of squares)
    i = pl.program_id(0)

    @pl.when(i == 0)
    def _init():
        stats_ref[...] = jnp.zeros_like(stats_ref)

    x = jnp.dot(p_ref[...], w_ref[...], preferred_element_type=jnp.float32)
    conv_ref[...] = x

    stats_ref[0:1, :] = stats_ref[0:1, :] + jnp.sum(x, axis=0, keepdims=True)
    stats_ref[1:2, :] = stats_ref[1:2, :] + jnp.sum(x * x, axis=0, keepdims=True)


# ---------------------------------------------------------------------------
# Pass 2: normalize (affine-folded) + LeakyReLU
# ---------------------------------------------------------------------------
def normalize_kernel(conv_ref, scale_ref, shift_ref, o_ref):
    # conv_ref:  [TILE_M, C_pad] f32
    # scale_ref: [1, C_pad]      f32  (= gamma * rsqrt(var + eps))
    # shift_ref: [1, C_pad]      f32  (= beta - mean * scale)
    y = conv_ref[...] * scale_ref[...] + shift_ref[...]
    o_ref[...] = jnp.where(y > 0, y, LEAKY_SLOPE * y)


# ---------------------------------------------------------------------------
# im2col (kept in bf16 so the patch intermediate is half-width)
# TODO(synk): replace with implicit im2col (halo BlockSpecs / pl.ANY + shifted
#             accumulating dots) to avoid the kh*kw HBM expansion entirely.
# ---------------------------------------------------------------------------
def _im2col(x, kh, kw, stride, padding):
    n, c, h, w = x.shape
    xp = jnp.pad(x, ((0, 0), (0, 0), (padding, padding), (padding, padding)))
    ho = (h + 2 * padding - kh) // stride + 1
    wo = (w + 2 * padding - kw) // stride + 1
    cols = []
    for i in range(kh):
        for j in range(kw):
            cols.append(xp[:, :, i:i + stride * ho:stride, j:j + stride * wo:stride])
    patches = jnp.stack(cols, axis=2)                       # [N, C, kh*kw, Ho, Wo]
    patches = patches.transpose(0, 3, 4, 1, 2).reshape(n * ho * wo, c * kh * kw)
    return patches, ho, wo                                   # rows (n,ho,wo), cols (c,kh,kw)


@functools.partial(jax.jit, static_argnames=("stride", "padding", "tile_m"))
def cnn_block_forward(x, conv_w, bn_gamma, bn_beta, *, stride=1, padding=1, tile_m=512):
    """x: [N, C_in, H, W] (NCHW). conv_w: [C_out, C_in, kh, kw]. Returns NCHW."""
    n, c_in, h, w = x.shape
    c_out, _, kh, kw = conv_w.shape

    patches, ho, wo = _im2col(x.astype(jnp.bfloat16), kh, kw, stride, padding)
    m, k = patches.shape

    c_pad = _round_up(c_out, 128)          # lane-dense output / full MXU N
    k_pad = _round_up(k, 128)              # clean contraction-dim tiles
    m_pad = _round_up(m, tile_m)

    patches = jnp.pad(patches, ((0, m_pad - m), (0, k_pad - k)))

    # Weight built directly as [K, C_out] with rows ordered (c_in, kh, kw) to match
    # the im2col column order (no .T on an f32 copy).
    w2d = conv_w.astype(jnp.bfloat16).transpose(1, 2, 3, 0).reshape(k, c_out)
    w2d = jnp.pad(w2d, ((0, k_pad - k), (0, c_pad - c_out)))

    n_tiles = m_pad // tile_m

    # -------- Pass 1: conv matmul + BN stat accumulation --------------------
    vmem1 = (2 * tile_m * k_pad * 2          # patches tile, bf16, double-buffered
             + 2 * k_pad * c_pad * 2         # weights, bf16
             + 2 * tile_m * c_pad * 4        # conv output tile, f32
             + 2 * 8 * c_pad * 4)            # stats accumulator
    conv_out, stats = pl.pallas_call(
        conv_stats_kernel,
        out_shape=(jax.ShapeDtypeStruct((m_pad, c_pad), jnp.float32),
                   jax.ShapeDtypeStruct((8, c_pad), jnp.float32)),
        grid_spec=pltpu.PrefetchScalarGridSpec(
            num_scalar_prefetch=0,
            grid=(n_tiles,),
            in_specs=[pl.BlockSpec((tile_m, k_pad), lambda i: (i, 0)),
                      pl.BlockSpec((k_pad, c_pad), lambda i: (0, 0))],
            out_specs=[pl.BlockSpec((tile_m, c_pad), lambda i: (i, 0)),
                       pl.BlockSpec((8, c_pad), lambda i: (0, 0))]),
        compiler_params=pltpu.CompilerParams(
            dimension_semantics=("arbitrary",),          # stats accumulate across M tiles
            vmem_limit_bytes=_vmem_limit_bytes(vmem1)),
    )(patches, w2d)

    # -------- Finalize BN stats (tiny [C_pad] vectors; left to XLA) ---------
    # Training-mode BatchNorm2d: biased variance over (N, H, W).
    # TODO(synk): running_mean / running_var momentum update is not implemented.
    inv_m = 1.0 / float(m)
    mean = stats[0] * inv_m
    var = jnp.maximum(stats[1] * inv_m - mean * mean, 0.0)
    inv_std = jax.lax.rsqrt(var + BN_EPS)
    gamma = jnp.pad(bn_gamma.astype(jnp.float32), (0, c_pad - c_out))
    beta = jnp.pad(bn_beta.astype(jnp.float32), (0, c_pad - c_out))
    scale_vec = gamma * inv_std
    scale = scale_vec.reshape(1, c_pad)
    shift = (beta - mean * scale_vec).reshape(1, c_pad)

    # -------- Pass 2: normalize + LeakyReLU, parallel over M tiles ----------
    vmem2 = (2 * tile_m * c_pad * 4          # conv input tile
             + 2 * tile_m * c_pad * 4        # output tile
             + 4 * c_pad * 4 * 2)            # scale / shift
    out = pl.pallas_call(
        normalize_kernel,
        out_shape=jax.ShapeDtypeStruct((m_pad, c_pad), jnp.float32),
        grid_spec=pltpu.PrefetchScalarGridSpec(
            num_scalar_prefetch=0,
            grid=(n_tiles,),
            in_specs=[pl.BlockSpec((tile_m, c_pad), lambda i: (i, 0)),
                      pl.BlockSpec((1, c_pad), lambda i: (0, 0)),
                      pl.BlockSpec((1, c_pad), lambda i: (0, 0))],
            out_specs=pl.BlockSpec((tile_m, c_pad), lambda i: (i, 0))),
        compiler_params=pltpu.CompilerParams(
            dimension_semantics=("parallel",),
            vmem_limit_bytes=_vmem_limit_bytes(vmem2)),
    )(conv_out, scale, shift)

    # [M, C_pad] -> real rows/channels -> [N, Ho, Wo, C_out] -> NCHW
    # (kept NCHW to preserve the PyTorch module's output layout)
    return out[:m, :c_out].reshape(n, ho, wo, c_out).transpose(0, 3, 1, 2)


if __name__ == "__main__":
    # CNNBlock(in_channels=4, out_channels=8, kernel_size=3, stride=1, padding=1)
    N, C_IN, H, W = 2, 4, 16, 16
    C_OUT, KH, KW = 8, 3, 3
    STRIDE, PADDING = 1, 1

    key = jax.random.PRNGKey(0)
    k_x, k_w = jax.random.split(key)

    x = jax.random.normal(k_x, (N, C_IN, H, W), dtype=jnp.float32)
    conv_w = jax.random.normal(k_w, (C_OUT, C_IN, KH, KW), dtype=jnp.float32) * 0.1
    bn_gamma = jnp.ones((C_OUT,), dtype=jnp.float32)
    bn_beta = jnp.zeros((C_OUT,), dtype=jnp.float32)

    out = cnn_block_forward(x, conv_w, bn_gamma, bn_beta,
                            stride=STRIDE, padding=PADDING)
    jax.block_until_ready(out)
    assert out.shape == (N, C_OUT, H, W), out.shape
    assert bool(jnp.all(jnp.isfinite(out))), "non-finite output"
    print("KERNEL_OK")
</pallas_src>

<mosaic_0001>
module attributes {stable_mosaic.version = 11 : i64} {
  func.func @conv_stats_kernel(%arg0: i32, %arg1: memref<512x128xbf16, #tpu.memory_space<vmem>>, %arg2: memref<128x128xbf16, #tpu.memory_space<vmem>>, %arg3: memref<512x128xf32, #tpu.memory_space<vmem>>, %arg4: memref<8x128xf32, #tpu.memory_space<vmem>>) attributes {dimension_semantics = [#tpu.dimension_semantics<arbitrary>], iteration_bounds = array<i64: 1>, scalar_prefetch = 0 : i64, scratch_operands = 0 : i64, tpu.core_type = #tpu.core_type<tc>, window_params = [{transform_indices = @transform_0, window_bounds = array<i64: 512, 128>}, {pipeline_mode = #tpu.pipeline_mode<synchronous>, transform_indices = @transform_1, window_bounds = array<i64: 128, 128>}, {transform_indices = @transform_2, window_bounds = array<i64: 512, 128>}, {pipeline_mode = #tpu.pipeline_mode<synchronous>, transform_indices = @transform_3, window_bounds = array<i64: 8, 128>}]} {
    %c0_i32 = arith.constant 0 : i32
    %0 = arith.cmpi eq, %arg0, %c0_i32 : i32
    %1 = arith.extui %0 : i1 to i32
    %c0_i32_0 = arith.constant 0 : i32
    %2 = arith.cmpi ne, %1, %c0_i32_0 : i32
    scf.if %2 {
      %cst_15 = arith.constant 0.000000e+00 : f32
      %18 = vector.broadcast %cst_15 : f32 to vector<8x128xf32>
      %c0_16 = arith.constant 0 : index
      %c0_17 = arith.constant 0 : index
      %19 = vector.load %arg4[%c0_16, %c0_17] : memref<8x128xf32, #tpu.memory_space<vmem>>, vector<8x128xf32>
      tpu.vector_store %arg4[%c0_16, %c0_17], %18 {strides = array<i32>} : memref<8x128xf32, #tpu.memory_space<vmem>>, vector<8x128xf32>,
    } else {
    }
    %c0 = arith.constant 0 : index
    %c0_1 = arith.constant 0 : index
    %3 = vector.load %arg1[%c0, %c0_1] : memref<512x128xbf16, #tpu.memory_space<vmem>>, vector<512x128xbf16>
    %c0_2 = arith.constant 0 : index
    %c0_3 = arith.constant 0 : index
    %4 = vector.load %arg2[%c0_2, %c0_3] : memref<128x128xbf16, #tpu.memory_space<vmem>>, vector<128x128xbf16>
    %cst = arith.constant dense<0.000000e+00> : vector<512x128xf32>
    %5 = tpu.matmul %3, %4, %cst {dimension_numbers = #tpu.dot_dimension_numbers<[1], [0], [0], [1], [0, 0, 1, 1], [], []>} : vector<512x128xbf16>, vector<128x128xbf16>, vector<512x128xf32> -> vector<512x128xf32>
    %c0_4 = arith.constant 0 : index
    %c0_5 = arith.constant 0 : index
    %6 = vector.load %arg3[%c0_4, %c0_5] : memref<512x128xf32, #tpu.memory_space<vmem>>, vector<512x128xf32>
    tpu.vector_store %arg3[%c0_4, %c0_5], %5 {strides = array<i32>} : memref<512x128xf32, #tpu.memory_space<vmem>>, vector<512x128xf32>,
    %c0_6 = arith.constant 0 : index
    %c0_7 = arith.constant 0 : index
    %7 = vector.load %arg4[%c0_6, %c0_7] : memref<8x128xf32, #tpu.memory_space<vmem>>, vector<1x128xf32>
    %cst_8 = arith.constant dense<0.000000e+00> : vector<128xf32>
    %8 = vector.multi_reduction <add>, %5, %cst_8 [0] : vector<512x128xf32> to vector<128xf32>
    %9 = vector.shape_cast %8 : vector<128xf32> to vector<1x128xf32>
    %10 = arith.addf %7, %9 : vector<1x128xf32>
    %c0_9 = arith.constant 0 : index
    %c0_10 = arith.constant 0 : index
    %11 = vector.load %arg4[%c0_9, %c0_10] : memref<8x128xf32, #tpu.memory_space<vmem>>, vector<1x128xf32>
    tpu.vector_store %arg4[%c0_9, %c0_10], %10 {strides = array<i32>} : memref<8x128xf32, #tpu.memory_space<vmem>>, vector<1x128xf32>,
    %c1 = arith.constant 1 : index
    %c0_11 = arith.constant 0 : index
    %12 = vector.load %arg4[%c1, %c0_11] : memref<8x128xf32, #tpu.memory_space<vmem>>, vector<1x128xf32>
    %13 = arith.mulf %5, %5 : vector<512x128xf32>
    %cst_12 = arith.constant dense<0.000000e+00> : vector<128xf32>
    %14 = vector.multi_reduction <add>, %13, %cst_12 [0] : vector<512x128xf32> to vector<128xf32>
    %15 = vector.shape_cast %14 : vector<128xf32> to vector<1x128xf32>
    %16 = arith.addf %12, %15 : vector<1x128xf32>
    %c1_13 = arith.constant 1 : index
    %c0_14 = arith.constant 0 : index
    %17 = vector.load %arg4[%c1_13, %c0_14] : memref<8x128xf32, #tpu.memory_space<vmem>>, vector<1x128xf32>
    tpu.vector_store %arg4[%c1_13, %c0_14], %16 {strides = array<i32>} : memref<8x128xf32, #tpu.memory_space<vmem>>, vector<1x128xf32>,
    return
  }
  func.func @transform_0(%arg0: i32) -> (i32, i32) {
    %c0_i32 = arith.constant 0 : i32
    %c0_i32_0 = arith.constant 0 : i32
    return %arg0, %c0_i32 : i32, i32
  }
  func.func @transform_1(%arg0: i32) -> (i32, i32) {
    %c0_i32 = arith.constant 0 : i32
    %c0_i32_0 = arith.constant 0 : i32
    %c0_i32_1 = arith.constant 0 : i32
    return %c0_i32, %c0_i32_0 : i32, i32
  }
  func.func @transform_2(%arg0: i32) -> (i32, i32) {
    %c0_i32 = arith.constant 0 : i32
    %c0_i32_0 = arith.constant 0 : i32
    return %arg0, %c0_i32 : i32, i32
  }
  func.func @transform_3(%arg0: i32) -> (i32, i32) {
    %c0_i32 = arith.constant 0 : i32
    %c0_i32_0 = arith.constant 0 : i32
    %c0_i32_1 = arith.constant 0 : i32
    return %c0_i32, %c0_i32_0 : i32, i32
  }
}

module attributes {stable_mosaic.version = 11 : i64} {
  func.func @normalize_kernel(%arg0: i32, %arg1: memref<512x128xf32, #tpu.memory_space<vmem>>, %arg2: memref<1x128xf32, #tpu.memory_space<vmem>>, %arg3: memref<1x128xf32, #tpu.memory_space<vmem>>, %arg4: memref<512x128xf32, #tpu.memory_space<vmem>>) attributes {dimension_semantics = [#tpu.dimension_semantics<parallel>], iteration_bounds = array<i64: 1>, scalar_prefetch = 0 : i64, scratch_operands = 0 : i64, tpu.core_type = #tpu.core_type<tc>, window_params = [{transform_indices = @transform_0, window_bounds = array<i64: 512, 128>}, {pipeline_mode = #tpu.pipeline_mode<synchronous>, transform_indices = @transform_1, window_bounds = array<i64: 1, 128>}, {pipeline_mode = #tpu.pipeline_mode<synchronous>, transform_indices = @transform_2, window_bounds = array<i64: 1, 128>}, {transform_indices = @transform_3, window_bounds = array<i64: 512, 128>}]} {
    %c0 = arith.constant 0 : index
    %c0_0 = arith.constant 0 : index
    %0 = vector.load %arg1[%c0, %c0_0] : memref<512x128xf32, #tpu.memory_space<vmem>>, vector<512x128xf32>
    %c0_1 = arith.constant 0 : index
    %c0_2 = arith.constant 0 : index
    %1 = vector.load %arg2[%c0_1, %c0_2] : memref<1x128xf32, #tpu.memory_space<vmem>>, vector<1x128xf32>
    %2 = vector.broadcast %1 : vector<1x128xf32> to vector<512x128xf32>
    %3 = arith.mulf %0, %2 : vector<512x128xf32>
    %c0_3 = arith.constant 0 : index
    %c0_4 = arith.constant 0 : index
    %4 = vector.load %arg3[%c0_3, %c0_4] : memref<1x128xf32, #tpu.memory_space<vmem>>, vector<1x128xf32>
    %5 = vector.broadcast %4 : vector<1x128xf32> to vector<512x128xf32>
    %6 = arith.addf %3, %5 : vector<512x128xf32>
    %cst = arith.constant 0.000000e+00 : f32
    %7 = vector.broadcast %cst : f32 to vector<512x128xf32>
    %8 = arith.cmpf ogt, %6, %7 : vector<512x128xf32>
    %cst_5 = arith.constant 1.000000e-01 : f32
    %9 = vector.broadcast %cst_5 : f32 to vector<512x128xf32>
    %10 = arith.mulf %9, %6 : vector<512x128xf32>
    %11 = arith.select %8, %6, %10 : vector<512x128xi1>, vector<512x128xf32>
    %c0_6 = arith.constant 0 : index
    %c0_7 = arith.constant 0 : index
    %12 = vector.load %arg4[%c0_6, %c0_7] : memref<512x128xf32, #tpu.memory_space<vmem>>, vector<512x128xf32>
    tpu.vector_store %arg4[%c0_6, %c0_7], %11 {strides = array<i32>} : memref<512x128xf32, #tpu.memory_space<vmem>>, vector<512x128xf32>,
    return
  }
  func.func @transform_0(%arg0: i32) -> (i32, i32) {
    %c0_i32 = arith.constant 0 : i32
    %c0_i32_0 = arith.constant 0 : i32
    return %arg0, %c0_i32 : i32, i32
  }
  func.func @transform_1(%arg0: i32) -> (i32, i32) {
    %c0_i32 = arith.constant 0 : i32
    %c0_i32_0 = arith.constant 0 : i32
    %c0_i32_1 = arith.constant 0 : i32
    return %c0_i32, %c0_i32_0 : i32, i32
  }
  func.func @transform_2(%arg0: i32) -> (i32, i32) {
    %c0_i32 = arith.constant 0 : i32
    %c0_i32_0 = arith.constant 0 : i32
    %c0_i32_1 = arith.constant 0 : i32
    return %c0_i32, %c0_i32_0 : i32, i32
  }
  func.func @transform_3(%arg0: i32) -> (i32, i32) {
    %c0_i32 = arith.constant 0 : i32
    %c0_i32_0 = arith.constant 0 : i32
    return %arg0, %c0_i32 : i32, i32
  }
}

</mosaic_0001>

<llo_original>
// kernel: cnn_block_forward.3
$region0: #{cnn_block_forward.3}
  #allocation0 [shape = 'u32[]', space=smem, size = 0x4, offset = 0x4, fixed_abs, tag = 'smem constant byte address 0x4 - core index']
  #allocation1 [shape = 'u32[144,128]{1,0:T(1,128)}', space=vmem, size = 0x12000, scoped, tag = 'internal scratch']
  %s0 = inlined_call_operand.vmem [shape: f32[512,128], index: 0, kind: input, shape index: {}]
  %s1 = inlined_call_operand.vmem [shape: f32[1,128], index: 1, kind: input, shape index: {}]
  %s2 = inlined_call_operand.vmem [shape: f32[1,128], index: 2, kind: input, shape index: {}]
  %s3 = inlined_call_operand.vmem [shape: f32[512,128], index: 3, kind: output, shape index: {}]
  %s4 = sld [smem:[#allocation0]]
  $region22: #{cnn_block_forward.3} parent=0
    _
  %s6 = ssub.s32 1, %s4
  %s7 = scalar_select 0, %s6, %s4
  // Predicated region
  $region2: #{cnn_block_forward.3} parent=0 // pred_check
    _
  $region3: #{cnn_block_forward.3} parent=0 // pred_check_branch
    %9 = sbr.rel (0) target = $region5
  $region4: #{cnn_block_forward.3} parent=0 // pred_region
    _
  $region5: #{cnn_block_forward.3} parent=0 // pred_fallthru
    _
  // Predicated region
  $region6: #{cnn_block_forward.3} parent=0 // pred_check
    _
  $region7: #{cnn_block_forward.3} parent=0 // pred_check_branch
    %11 = sbr.rel (0) target = $region9
  $region8: #{cnn_block_forward.3} parent=0 // pred_region
    _
  $region9: #{cnn_block_forward.3} parent=0 // pred_fallthru
    _
  // Predicated region
  $region10: #{cnn_block_forward.3} parent=0 // pred_check
    _
  $region11: #{cnn_block_forward.3} parent=0 // pred_check_branch
    %13 = sbr.rel (0) target = $region13
  $region12: #{cnn_block_forward.3} parent=0 // pred_region
    _
  $region13: #{cnn_block_forward.3} parent=0 // pred_fallthru
    _
  %v14 = vld [vmem:[%s0] sm:$0xff]
  %v15 = vld [vmem:[%s0 + $0x8] sm:$0xff]
  %v16 = vld [vmem:[%s0 + $0x10] sm:$0xff]
  %v17 = vld [vmem:[%s0 + $0x18] sm:$0xff]
  %v18 = vld [vmem:[%s0 + $0x20] sm:$0xff]
  %v19 = vld [vmem:[%s0 + $0x28] sm:$0xff]
  %v20 = vld [vmem:[%s0 + $0x30] sm:$0xff]
  %v21 = vld [vmem:[%s0 + $0x38] sm:$0xff]
  %v22 = vld [vmem:[%s0 + $0x40] sm:$0xff]
  %v23 = vld [vmem:[%s0 + $0x48] sm:$0xff]
  %v24 = vld [vmem:[%s0 + $0x50] sm:$0xff]
  %v25 = vld [vmem:[%s0 + $0x58] sm:$0xff]
  %v26 = vld [vmem:[%s0 + $0x60] sm:$0xff]
  %v27 = vld [vmem:[%s0 + $0x68] sm:$0xff]
  %v28 = vld [vmem:[%s0 + $0x70] sm:$0xff]
  %v29 = vld [vmem:[%s0 + $0x78] sm:$0xff]
  %v30 = vld [vmem:[%s0 + $0x80] sm:$0xff]
  %v31 = vld [vmem:[%s0 + $0x88] sm:$0xff]
  %v32 = vld [vmem:[%s0 + $0x90] sm:$0xff]
  %v33 = vld [vmem:[%s0 + $0x98] sm:$0xff]
  %v34 = vld [vmem:[%s0 + $0xa0] sm:$0xff]
  %v35 = vld [vmem:[%s0 + $0xa8] sm:$0xff]
  %v36 = vld [vmem:[%s0 + $0xb0] sm:$0xff]
  %v37 = vld [vmem:[%s0 + $0xb8] sm:$0xff]
  %v38 = vld [vmem:[%s0 + $0xc0] sm:$0xff]
  %v39 = vld [vmem:[%s0 + $0xc8] sm:$0xff]
  %v40 = vld [vmem:[%s0 + $0xd0] sm:$0xff]
  %v41 = vld [vmem:[%s0 + $0xd8] sm:$0xff]
  %v42 = vld [vmem:[%s0 + $0xe0] sm:$0xff]
  %v43 = vld [vmem:[%s0 + $0xe8] sm:$0xff]
  %v44 = vld [vmem:[%s0 + $0xf0] sm:$0xff]
  %v45 = vld [vmem:[%s0 + $0xf8] sm:$0xff]
  %v46 = vld [vmem:[%s0 + $0x100] sm:$0xff]
  %v47 = vld [vmem:[%s0 + $0x108] sm:$0xff]
  %v48 = vld [vmem:[%s0 + $0x110] sm:$0xff]
  %v49 = vld [vmem:[%s0 + $0x118] sm:$0xff]
  %v50 = vld [vmem:[%s0 + $0x120] sm:$0xff]
  %v51 = vld [vmem:[%s0 + $0x128] sm:$0xff]
  %v52 = vld [vmem:[%s0 + $0x130] sm:$0xff]
  %v53 = vld [vmem:[%s0 + $0x138] sm:$0xff]
  %v54 = vld [vmem:[%s0 + $0x140] sm:$0xff]
  %v55 = vld [vmem:[%s0 + $0x148] sm:$0xff]
  %v56 = vld [vmem:[%s0 + $0x150] sm:$0xff]
  %v57 = vld [vmem:[%s0 + $0x158] sm:$0xff]
  %v58 = vld [vmem:[%s0 + $0x160] sm:$0xff]
  %v59 = vld [vmem:[%s0 + $0x168] sm:$0xff]
  %v60 = vld [vmem:[%s0 + $0x170] sm:$0xff]
  %v61 = vld [vmem:[%s0 + $0x178] sm:$0xff]
  %v62 = vld [vmem:[%s0 + $0x180] sm:$0xff]
  %v63 = vld [vmem:[%s0 + $0x188] sm:$0xff]
  %v64 = vld [vmem:[%s0 + $0x190] sm:$0xff]
  %v65 = vld [vmem:[%s0 + $0x198] sm:$0xff]
  %v66 = vld [vmem:[%s0 + $0x1a0] sm:$0xff]
  %v67 = vld [vmem:[%s0 + $0x1a8] sm:$0xff]
  %v68 = vld [vmem:[%s0 + $0x1b0] sm:$0xff]
  %v69 = vld [vmem:[%s0 + $0x1b8] sm:$0xff]
  %v70 = vld [vmem:[%s0 + $0x1c0] sm:$0xff]
  %v71 = vld [vmem:[%s0 + $0x1c8] sm:$0xff]
  %v72 = vld [vmem:[%s0 + $0x1d0] sm:$0xff]
  %v73 = vld [vmem:[%s0 + $0x1d8] sm:$0xff]
  %v74 = vld [vmem:[%s0 + $0x1e0] sm:$0xff]
  %v75 = vld [vmem:[%s0 + $0x1e8] sm:$0xff]
  %v76 = vld [vmem:[%s0 + $0x1f0] sm:$0xff]
  %v77 = vld [vmem:[%s0 + $0x1f8] sm:$0xff]
  %v78 = vld [vmem:[%s1] sm:$0x1]
  %v80 = vlaneseq
  %v81 = vshrl.u32 %v80, 7
  %v82 = vsub.s32 0, %v81
  %v83 = vrot.slane %v78, %v82
  %v85 = vmul.f32 %v14, %v83
  %v86 = vmul.f32 %v15, %v83
  %v87 = vmul.f32 %v16, %v83
  %v88 = vmul.f32 %v17, %v83
  %v89 = vmul.f32 %v18, %v83
  %v90 = vmul.f32 %v19, %v83
  %v91 = vmul.f32 %v20, %v83
  %v92 = vmul.f32 %v21, %v83
  %v93 = vmul.f32 %v22, %v83
  %v94 = vmul.f32 %v23, %v83
  %v95 = vmul.f32 %v24, %v83
  %v96 = vmul.f32 %v25, %v83
  %v97 = vmul.f32 %v26, %v83
  %v98 = vmul.f32 %v27, %v83
  %v99 = vmul.f32 %v28, %v83
  %v100 = vmul.f32 %v29, %v83
  %v101 = vmul.f32 %v30, %v83
  %v102 = vmul.f32 %v31, %v83
  %v103 = vmul.f32 %v32, %v83
  %v104 = vmul.f32 %v33, %v83
  %v105 = vmul.f32 %v34, %v83
  %v106 = vmul.f32 %v35, %v83
  %v107 = vmul.f32 %v36, %v83
  %v108 = vmul.f32 %v37, %v83
  %v109 = vmul.f32 %v38, %v83
  %v110 = vmul.f32 %v39, %v83
  %v111 = vmul.f32 %v40, %v83
  %v112 = vmul.f32 %v41, %v83
  %v113 = vmul.f32 %v42, %v83
  %v114 = vmul.f32 %v43, %v83
  %v115 = vmul.f32 %v44, %v83
  %v116 = vmul.f32 %v45, %v83
  %v117 = vmul.f32 %v46, %v83
  %v118 = vmul.f32 %v47, %v83
  %v119 = vmul.f32 %v48, %v83
  %v120 = vmul.f32 %v49, %v83
  %v121 = vmul.f32 %v50, %v83
  %v122 = vmul.f32 %v51, %v83
  %v123 = vmul.f32 %v52, %v83
  %v124 = vmul.f32 %v53, %v83
  %v125 = vmul.f32 %v54, %v83
  %v126 = vmul.f32 %v55, %v83
  %v127 = vmul.f32 %v56, %v83
  %v128 = vmul.f32 %v57, %v83
  %v129 = vmul.f32 %v58, %v83
  %v130 = vmul.f32 %v59, %v83
  %v131 = vmul.f32 %v60, %v83
  %v132 = vmul.f32 %v61, %v83
  %v133 = vmul.f32 %v62, %v83
  %v134 = vmul.f32 %v63, %v83
  %v135 = vmul.f32 %v64, %v83
  %v136 = vmul.f32 %v65, %v83
  %v137 = vmul.f32 %v66, %v83
  %v138 = vmul.f32 %v67, %v83
  %v139 = vmul.f32 %v68, %v83
  %v140 = vmul.f32 %v69, %v83
  %v141 = vmul.f32 %v70, %v83
  %v142 = vmul.f32 %v71, %v83
  %v143 = vmul.f32 %v72, %v83
  %v144 = vmul.f32 %v73, %v83
  %v145 = vmul.f32 %v74, %v83
  %v146 = vmul.f32 %v75, %v83
  %v147 = vmul.f32 %v76, %v83
  %v148 = vmul.f32 %v77, %v83
  %v149 = vld [vmem:[%s2] sm:$0x1]
  %v151 = vlaneseq
  %v152 = vshrl.u32 %v151, 7
  %v153 = vsub.s32 0, %v152
  %v154 = vrot.slane %v149, %v153
  %v156 = vadd.f32 %v85, %v154
  %v157 = vadd.f32 %v86, %v154
  %v158 = vadd.f32 %v87, %v154
  %v159 = vadd.f32 %v88, %v154
  %v160 = vadd.f32 %v89, %v154
  %v161 = vadd.f32 %v90, %v154
  %v162 = vadd.f32 %v91, %v154
  %v163 = vadd.f32 %v92, %v154
  %v164 = vadd.f32 %v93, %v154
  %v165 = vadd.f32 %v94, %v154
  %v166 = vadd.f32 %v95, %v154
  %v167 = vadd.f32 %v96, %v154
  %v168 = vadd.f32 %v97, %v154
  %v169 = vadd.f32 %v98, %v154
  %v170 = vadd.f32 %v99, %v154
  %v171 = vadd.f32 %v100, %v154
  %v172 = vadd.f32 %v101, %v154
  %v173 = vadd.f32 %v102, %v154
  %v174 = vadd.f32 %v103, %v154
  %v175 = vadd.f32 %v104, %v154
  %v176 = vadd.f32 %v105, %v154
  %v177 = vadd.f32 %v106, %v154
  %v178 = vadd.f32 %v107, %v154
  %v179 = vadd.f32 %v108, %v154
  %v180 = vadd.f32 %v109, %v154
  %v181 = vadd.f32 %v110, %v154
  %v182 = vadd.f32 %v111, %v154
  %v183 = vadd.f32 %v112, %v154
  %v184 = vadd.f32 %v113, %v154
  %v185 = vadd.f32 %v114, %v154
  %v186 = vadd.f32 %v115, %v154
  %v187 = vadd.f32 %v116, %v154
  %v188 = vadd.f32 %v117, %v154
  %v189 = vadd.f32 %v118, %v154
  %v190 = vadd.f32 %v119, %v154
  %v191 = vadd.f32 %v120, %v154
  %v192 = vadd.f32 %v121, %v154
  %v193 = vadd.f32 %v122, %v154
  %v194 = vadd.f32 %v123, %v154
  %v195 = vadd.f32 %v124, %v154
  %v196 = vadd.f32 %v125, %v154
  %v197 = vadd.f32 %v126, %v154
  %v198 = vadd.f32 %v127, %v154
  %v199 = vadd.f32 %v128, %v154
  %v200 = vadd.f32 %v129, %v154
  %v201 = vadd.f32 %v130, %v154
  %v202 = vadd.f32 %v131, %v154
  %v203 = vadd.f32 %v132, %v154
  %v204 = vadd.f32 %v133, %v154
  %v205 = vadd.f32 %v134, %v154
  %v206 = vadd.f32 %v135, %v154
  %v207 = vadd.f32 %v136, %v154
  %v208 = vadd.f32 %v137, %v154
  %v209 = vadd.f32 %v138, %v154
  %v210 = vadd.f32 %v139, %v154
  %v211 = vadd.f32 %v140, %v154
  %v212 = vadd.f32 %v141, %v154
  %v213 = vadd.f32 %v142, %v154
  %v214 = vadd.f32 %v143, %v154
  %v215 = vadd.f32 %v144, %v154
  %v216 = vadd.f32 %v145, %v154
  %v217 = vadd.f32 %v146, %v154
  %v218 = vadd.f32 %v147, %v154
  %v219 = vadd.f32 %v148, %v154
  %vm220 = vcmp.gt.f32.partialorder %v156, 0.0
  %vm221 = vcmp.gt.f32.partialorder %v157, 0.0
  %vm222 = vcmp.gt.f32.partialorder %v158, 0.0
  %vm223 = vcmp.gt.f32.partialorder %v159, 0.0
  %vm224 = vcmp.gt.f32.partialorder %v160, 0.0
  %vm225 = vcmp.gt.f32.partialorder %v161, 0.0
  %vm226 = vcmp.gt.f32.partialorder %v162, 0.0
  %vm227 = vcmp.gt.f32.partialorder %v163, 0.0
  %vm228 = vcmp.gt.f32.partialorder %v164, 0.0
  %vm229 = vcmp.gt.f32.partialorder %v165, 0.0
  %vm230 = vcmp.gt.f32.partialorder %v166, 0.0
  %vm231 = vcmp.gt.f32.partialorder %v167, 0.0
  %vm232 = vcmp.gt.f32.partialorder %v168, 0.0
  %vm233 = vcmp.gt.f32.partialorder %v169, 0.0
  %vm234 = vcmp.gt.f32.partialorder %v170, 0.0
  %vm235 = vcmp.gt.f32.partialorder %v171, 0.0
  %vm236 = vcmp.gt.f32.partialorder %v172, 0.0
  %vm237 = vcmp.gt.f32.partialorder %v173, 0.0
  %vm238 = vcmp.gt.f32.partialorder %v174, 0.0
  %vm239 = vcmp.gt.f32.partialorder %v175, 0.0
  %vm240 = vcmp.gt.f32.partialorder %v176, 0.0
  %vm241 = vcmp.gt.f32.partialorder %v177, 0.0
  %vm242 = vcmp.gt.f32.partialorder %v178, 0.0
  %vm243 = vcmp.gt.f32.partialorder %v179, 0.0
  %vm244 = vcmp.gt.f32.partialorder %v180, 0.0
  %vm245 = vcmp.gt.f32.partialorder %v181, 0.0
  %vm246 = vcmp.gt.f32.partialorder %v182, 0.0
  %vm247 = vcmp.gt.f32.partialorder %v183, 0.0
  %vm248 = vcmp.gt.f32.partialorder %v184, 0.0
  %vm249 = vcmp.gt.f32.partialorder %v185, 0.0
  %vm250 = vcmp.gt.f32.partialorder %v186, 0.0
  %vm251 = vcmp.gt.f32.partialorder %v187, 0.0
  %vm252 = vcmp.gt.f32.partialorder %v188, 0.0
  %vm253 = vcmp.gt.f32.partialorder %v189, 0.0
  %vm254 = vcmp.gt.f32.partialorder %v190, 0.0
  %vm255 = vcmp.gt.f32.partialorder %v191, 0.0
  %vm256 = vcmp.gt.f32.partialorder %v192, 0.0
  %vm257 = vcmp.gt.f32.partialorder %v193, 0.0
  %vm258 = vcmp.gt.f32.partialorder %v194, 0.0
  %vm259 = vcmp.gt.f32.partialorder %v195, 0.0
  %vm260 = vcmp.gt.f32.partialorder %v196, 0.0
  %vm261 = vcmp.gt.f32.partialorder %v197, 0.0
  %vm262 = vcmp.gt.f32.partialorder %v198, 0.0
  %vm263 = vcmp.gt.f32.partialorder %v199, 0.0
  %vm264 = vcmp.gt.f32.partialorder %v200, 0.0
  %vm265 = vcmp.gt.f32.partialorder %v201, 0.0
  %vm266 = vcmp.gt.f32.partialorder %v202, 0.0
  %vm267 = vcmp.gt.f32.partialorder %v203, 0.0
  %vm268 = vcmp.gt.f32.partialorder %v204, 0.0
  %vm269 = vcmp.gt.f32.partialorder %v205, 0.0
  %vm270 = vcmp.gt.f32.partialorder %v206, 0.0
  %vm271 = vcmp.gt.f32.partialorder %v207, 0.0
  %vm272 = vcmp.gt.f32.partialorder %v208, 0.0
  %vm273 = vcmp.gt.f32.partialorder %v209, 0.0
  %vm274 = vcmp.gt.f32.partialorder %v210, 0.0
  %vm275 = vcmp.gt.f32.partialorder %v211, 0.0
  %vm276 = vcmp.gt.f32.partialorder %v212, 0.0
  %vm277 = vcmp.gt.f32.partialorder %v213, 0.0
  %vm278 = vcmp.gt.f32.partialorder %v214, 0.0
  %vm279 = vcmp.gt.f32.partialorder %v215, 0.0
  %vm280 = vcmp.gt.f32.partialorder %v216, 0.0
  %vm281 = vcmp.gt.f32.partialorder %v217, 0.0
  %vm282 = vcmp.gt.f32.partialorder %v218, 0.0
  %vm283 = vcmp.gt.f32.partialorder %v219, 0.0
  %v284 = vmul.f32 %v156, 0.1
  %v285 = vmul.f32 %v157, 0.1
  %v286 = vmul.f32 %v158, 0.1
  %v287 = vmul.f32 %v159, 0.1
  %v288 = vmul.f32 %v160, 0.1
  %v289 = vmul.f32 %v161, 0.1
  %v290 = vmul.f32 %v162, 0.1
  %v291 = vmul.f32 %v163, 0.1
  %v292 = vmul.f32 %v164, 0.1
  %v293 = vmul.f32 %v165, 0.1
  %v294 = vmul.f32 %v166, 0.1
  %v295 = vmul.f32 %v167, 0.1
  %v296 = vmul.f32 %v168, 0.1
  %v297 = vmul.f32 %v169, 0.1
  %v298 = vmul.f32 %v170, 0.1
  %v299 = vmul.f32 %v171, 0.1
  %v300 = vmul.f32 %v172, 0.1
  %v301 = vmul.f32 %v173, 0.1
  %v302 = vmul.f32 %v174, 0.1
  %v303 = vmul.f32 %v175, 0.1
  %v304 = vmul.f32 %v176, 0.1
  %v305 = vmul.f32 %v177, 0.1
  %v306 = vmul.f32 %v178, 0.1
  %v307 = vmul.f32 %v179, 0.1
  %v308 = vmul.f32 %v180, 0.1
  %v309 = vmul.f32 %v181, 0.1
  %v310 = vmul.f32 %v182, 0.1
  %v311 = vmul.f32 %v183, 0.1
  %v312 = vmul.f32 %v184, 0.1
  %v313 = vmul.f32 %v185, 0.1
  %v314 = vmul.f32 %v186, 0.1
  %v315 = vmul.f32 %v187, 0.1
  %v316 = vmul.f32 %v188, 0.1
  %v317 = vmul.f32 %v189, 0.1
  %v318 = vmul.f32 %v190, 0.1
  %v319 = vmul.f32 %v191, 0.1
  %v320 = vmul.f32 %v192, 0.1
  %v321 = vmul.f32 %v193, 0.1
  %v322 = vmul.f32 %v194, 0.1
  %v323 = vmul.f32 %v195, 0.1
  %v324 = vmul.f32 %v196, 0.1
  %v325 = vmul.f32 %v197, 0.1
  %v326 = vmul.f32 %v198, 0.1
  %v327 = vmul.f32 %v199, 0.1
  %v328 = vmul.f32 %v200, 0.1
  %v329 = vmul.f32 %v201, 0.1
  %v330 = vmul.f32 %v202, 0.1
  %v331 = vmul.f32 %v203, 0.1
  %v332 = vmul.f32 %v204, 0.1
  %v333 = vmul.f32 %v205, 0.1
  %v334 = vmul.f32 %v206, 0.1
  %v335 = vmul.f32 %v207, 0.1
  %v336 = vmul.f32 %v208, 0.1
  %v337 = vmul.f32 %v209, 0.1
  %v338 = vmul.f32 %v210, 0.1
  %v339 = vmul.f32 %v211, 0.1
  %v340 = vmul.f32 %v212, 0.1
  %v341 = vmul.f32 %v213, 0.1
  %v342 = vmul.f32 %v214, 0.1
  %v343 = vmul.f32 %v215, 0.1
  %v344 = vmul.f32 %v216, 0.1
  %v345 = vmul.f32 %v217, 0.1
  %v346 = vmul.f32 %v218, 0.1
  %v347 = vmul.f32 %v219, 0.1
  %v348 = vsel %vm220, %v156, %v284
  %v349 = vsel %vm221, %v157, %v285
  %v350 = vsel %vm222, %v158, %v286
  %v351 = vsel %vm223, %v159, %v287
  %v352 = vsel %vm224, %v160, %v288
  %v353 = vsel %vm225, %v161, %v289
  %v354 = vsel %vm226, %v162, %v290
  %v355 = vsel %vm227, %v163, %v291
  %v356 = vsel %vm228, %v164, %v292
  %v357 = vsel %vm229, %v165, %v293
  %v358 = vsel %vm230, %v166, %v294
  %v359 = vsel %vm231, %v167, %v295
  %v360 = vsel %vm232, %v168, %v296
  %v361 = vsel %vm233, %v169, %v297
  %v362 = vsel %vm234, %v170, %v298
  %v363 = vsel %vm235, %v171, %v299
  %v364 = vsel %vm236, %v172, %v300
  %v365 = vsel %vm237, %v173, %v301
  %v366 = vsel %vm238, %v174, %v302
  %v367 = vsel %vm239, %v175, %v303
  %v368 = vsel %vm240, %v176, %v304
  %v369 = vsel %vm241, %v177, %v305
  %v370 = vsel %vm242, %v178, %v306
  %v371 = vsel %vm243, %v179, %v307
  %v372 = vsel %vm244, %v180, %v308
  %v373 = vsel %vm245, %v181, %v309
  %v374 = vsel %vm246, %v182, %v310
  %v375 = vsel %vm247, %v183, %v311
  %v376 = vsel %vm248, %v184, %v312
  %v377 = vsel %vm249, %v185, %v313
  %v378 = vsel %vm250, %v186, %v314
  %v379 = vsel %vm251, %v187, %v315
  %v380 = vsel %vm252, %v188, %v316
  %v381 = vsel %vm253, %v189, %v317
  %v382 = vsel %vm254, %v190, %v318
  %v383 = vsel %vm255, %v191, %v319
  %v384 = vsel %vm256, %v192, %v320
  %v385 = vsel %vm257, %v193, %v321
  %v386 = vsel %vm258, %v194, %v322
  %v387 = vsel %vm259, %v195, %v323
  %v388 = vsel %vm260, %v196, %v324
  %v389 = vsel %vm261, %v197, %v325
  %v390 = vsel %vm262, %v198, %v326
  %v391 = vsel %vm263, %v199, %v327
  %v392 = vsel %vm264, %v200, %v328
  %v393 = vsel %vm265, %v201, %v329
  %v394 = vsel %vm266, %v202, %v330
  %v395 = vsel %vm267, %v203, %v331
  %v396 = vsel %vm268, %v204, %v332
  %v397 = vsel %vm269, %v205, %v333
  %v398 = vsel %vm270, %v206, %v334
  %v399 = vsel %vm271, %v207, %v335
  %v400 = vsel %vm272, %v208, %v336
  %v401 = vsel %vm273, %v209, %v337
  %v402 = vsel %vm274, %v210, %v338
  %v403 = vsel %vm275, %v211, %v339
  %v404 = vsel %vm276, %v212, %v340
  %v405 = vsel %vm277, %v213, %v341
  %v406 = vsel %vm278, %v214, %v342
  %v407 = vsel %vm279, %v215, %v343
  %v408 = vsel %vm280, %v216, %v344
  %v409 = vsel %vm281, %v217, %v345
  %v410 = vsel %vm282, %v218, %v346
  %v411 = vsel %vm283, %v219, %v347
  %412 = vst [vmem:[%s3] sm:$0xff] %v348
  %413 = vst [vmem:[%s3 + $0x8] sm:$0xff] %v349
  %414 = vst [vmem:[%s3 + $0x10] sm:$0xff] %v350
  %415 = vst [vmem:[%s3 + $0x18] sm:$0xff] %v351
  %416 = vst [vmem:[%s3 + $0x20] sm:$0xff] %v352
  %417 = vst [vmem:[%s3 + $0x28] sm:$0xff] %v353
  %418 = vst [vmem:[%s3 + $0x30] sm:$0xff] %v354
  %419 = vst [vmem:[%s3 + $0x38] sm:$0xff] %v355
  %420 = vst [vmem:[%s3 + $0x40] sm:$0xff] %v356
  %421 = vst [vmem:[%s3 + $0x48] sm:$0xff] %v357
  %422 = vst [vmem:[%s3 + $0x50] sm:$0xff] %v358
  %423 = vst [vmem:[%s3 + $0x58] sm:$0xff] %v359
  %424 = vst [vmem:[%s3 + $0x60] sm:$0xff] %v360
  %425 = vst [vmem:[%s3 + $0x68] sm:$0xff] %v361
  %426 = vst [vmem:[%s3 + $0x70] sm:$0xff] %v362
  %427 = vst [vmem:[%s3 + $0x78] sm:$0xff] %v363
  %428 = vst [vmem:[%s3 + $0x80] sm:$0xff] %v364
  %429 = vst [vmem:[%s3 + $0x88] sm:$0xff] %v365
  %430 = vst [vmem:[%s3 + $0x90] sm:$0xff] %v366
  %431 = vst [vmem:[%s3 + $0x98] sm:$0xff] %v367
  %432 = vst [vmem:[%s3 + $0xa0] sm:$0xff] %v368
  %433 = vst [vmem:[%s3 + $0xa8] sm:$0xff] %v369
  %434 = vst [vmem:[%s3 + $0xb0] sm:$0xff] %v370
  %435 = vst [vmem:[%s3 + $0xb8] sm:$0xff] %v371
  %436 = vst [vmem:[%s3 + $0xc0] sm:$0xff] %v372
  %437 = vst [vmem:[%s3 + $0xc8] sm:$0xff] %v373
  %438 = vst [vmem:[%s3 + $0xd0] sm:$0xff] %v374
  %439 = vst [vmem:[%s3 + $0xd8] sm:$0xff] %v375
  %440 = vst [vmem:[%s3 + $0xe0] sm:$0xff] %v376
  %441 = vst [vmem:[%s3 + $0xe8] sm:$0xff] %v377
  %442 = vst [vmem:[%s3 + $0xf0] sm:$0xff] %v378
  %443 = vst [vmem:[%s3 + $0xf8] sm:$0xff] %v379
  %444 = vst [vmem:[%s3 + $0x100] sm:$0xff] %v380
  %445 = vst [vmem:[%s3 + $0x108] sm:$0xff] %v381
  %446 = vst [vmem:[%s3 + $0x110] sm:$0xff] %v382
  %447 = vst [vmem:[%s3 + $0x118] sm:$0xff] %v383
  %448 = vst [vmem:[%s3 + $0x120] sm:$0xff] %v384
  %449 = vst [vmem:[%s3 + $0x128] sm:$0xff] %v385
  %450 = vst [vmem:[%s3 + $0x130] sm:$0xff] %v386
  %451 = vst [vmem:[%s3 + $0x138] sm:$0xff] %v387
  %452 = vst [vmem:[%s3 + $0x140] sm:$0xff] %v388
  %453 = vst [vmem:[%s3 + $0x148] sm:$0xff] %v389
  %454 = vst [vmem:[%s3 + $0x150] sm:$0xff] %v390
  %455 = vst [vmem:[%s3 + $0x158] sm:$0xff] %v391
  %456 = vst [vmem:[%s3 + $0x160] sm:$0xff] %v392
  %457 = vst [vmem:[%s3 + $0x168] sm:$0xff] %v393
  %458 = vst [vmem:[%s3 + $0x170] sm:$0xff] %v394
  %459 = vst [vmem:[%s3 + $0x178] sm:$0xff] %v395
  %460 = vst [vmem:[%s3 + $0x180] sm:$0xff] %v396
  %461 = vst [vmem:[%s3 + $0x188] sm:$0xff] %v397
  %462 = vst [vmem:[%s3 + $0x190] sm:$0xff] %v398
  %463 = vst [vmem:[%s3 + $0x198] sm:$0xff] %v399
  %464 = vst [vmem:[%s3 + $0x1a0] sm:$0xff] %v400
  %465 = vst [vmem:[%s3 + $0x1a8] sm:$0xff] %v401
  %466 = vst [vmem:[%s3 + $0x1b0] sm:$0xff] %v402
  %467 = vst [vmem:[%s3 + $0x1b8] sm:$0xff] %v403
  %468 = vst [vmem:[%s3 + $0x1c0] sm:$0xff] %v404
  %469 = vst [vmem:[%s3 + $0x1c8] sm:$0xff] %v405
  %470 = vst [vmem:[%s3 + $0x1d0] sm:$0xff] %v406
  %471 = vst [vmem:[%s3 + $0x1d8] sm:$0xff] %v407
  %472 = vst [vmem:[%s3 + $0x1e0] sm:$0xff] %v408
  %473 = vst [vmem:[%s3 + $0x1e8] sm:$0xff] %v409
  %474 = vst [vmem:[%s3 + $0x1f0] sm:$0xff] %v410
  %475 = vst [vmem:[%s3 + $0x1f8] sm:$0xff] %v411
  // Predicated region
  $region14: #{cnn_block_forward.3} parent=0 // pred_check
    _
  $region15: #{cnn_block_forward.3} parent=0 // pred_check_branch
    %477 = sbr.rel (0) target = $region17
  $region16: #{cnn_block_forward.3} parent=0 // pred_region
    _
  $region17: #{cnn_block_forward.3} parent=0 // pred_fallthru
    _
  // Predicated region
  $region18: #{cnn_block_forward.3} parent=0 // pred_check
    _
  $region19: #{cnn_block_forward.3} parent=0 // pred_check_branch
    %479 = sbr.rel (0) target = $region21
  $region20: #{cnn_block_forward.3} parent=0 // pred_region
    _
  $region21: #{cnn_block_forward.3} parent=0 // pred_fallthru
    _

// kernel: cnn_block_forward.2
$region0: #{cnn_block_forward.2}
  #allocation0 [shape = 'u32[]', space=smem, size = 0x4, offset = 0x4, fixed_abs, tag = 'smem constant byte address 0x4 - core index']
  #allocation1 [shape = 'u32[144,128]{1,0:T(1,128)}', space=vmem, size = 0x12000, scoped, tag = 'internal scratch']
  %s0 = inlined_call_operand.vmem [shape: bf16[512,128], index: 0, kind: input, shape index: {}]
  %s1 = inlined_call_operand.vmem [shape: bf16[128,128], index: 1, kind: input, shape index: {}]
  %s2 = inlined_call_operand.vmem [shape: f32[512,128], index: 2, kind: output, shape index: {0}]
  %s3 = inlined_call_operand.vmem [shape: f32[8,128], index: 3, kind: output, shape index: {1}]
  %4 = xla_tuple %s2, %s3
  %s5 = sld [smem:[#allocation0]]
  $region30: #{cnn_block_forward.2} parent=0
    _
  %s7 = ssub.s32 1, %s5
  %s8 = scalar_select 0, %s7, %s5
  // Predicated region
  $region2: #{cnn_block_forward.2} parent=0 // pred_check
    _
  $region3: #{cnn_block_forward.2} parent=0 // pred_check_branch
    %10 = sbr.rel (0) target = $region5
  $region4: #{cnn_block_forward.2} parent=0 // pred_region
    _
  $region5: #{cnn_block_forward.2} parent=0 // pred_fallthru
    _
  // Predicated region
  $region6: #{cnn_block_forward.2} parent=0 // pred_check
    _
  $region7: #{cnn_block_forward.2} parent=0 // pred_check_branch
    %12 = sbr.rel (0) target = $region9
  $region8: #{cnn_block_forward.2} parent=0 // pred_region
    _
  $region9: #{cnn_block_forward.2} parent=0 // pred_fallthru
    _
  %p14 = scmp.eq.s32.totalorder 0, 0
  // Predicated region
  $region10: #{cnn_block_forward.2} parent=0 // pred_check
    %p15 = pneg %p14
  $region11: #{cnn_block_forward.2} parent=0 // pred_check_branch
    %17 = sbr.rel (%p15) target = $region13
  $region12: #{cnn_block_forward.2} parent=0 // pred_region
    %18 = vst [vmem:[%s3] sm:$0xff] 0.0
  $region13: #{cnn_block_forward.2} parent=0 // pred_fallthru
    _
  %v19 = vld [vmem:[%s0] sm:$0xf]
  %v20 = vld [vmem:[%s0 + $0x4] sm:$0xf]
  %v21 = vld [vmem:[%s0 + $0x8] sm:$0xf]
  %v22 = vld [vmem:[%s0 + $0xc] sm:$0xf]
  %v23 = vld [vmem:[%s0 + $0x10] sm:$0xf]
  %v24 = vld [vmem:[%s0 + $0x14] sm:$0xf]
  %v25 = vld [vmem:[%s0 + $0x18] sm:$0xf]
  %v26 = vld [vmem:[%s0 + $0x1c] sm:$0xf]
  %v27 = vld [vmem:[%s0 + $0x20] sm:$0xf]
  %v28 = vld [vmem:[%s0 + $0x24] sm:$0xf]
  %v29 = vld [vmem:[%s0 + $0x28] sm:$0xf]
  %v30 = vld [vmem:[%s0 + $0x2c] sm:$0xf]
  %v31 = vld [vmem:[%s0 + $0x30] sm:$0xf]
  %v32 = vld [vmem:[%s0 + $0x34] sm:$0xf]
  %v33 = vld [vmem:[%s0 + $0x38] sm:$0xf]
  %v34 = vld [vmem:[%s0 + $0x3c] sm:$0xf]
  %v35 = vld [vmem:[%s0 + $0x40] sm:$0xf]
  %v36 = vld [vmem:[%s0 + $0x44] sm:$0xf]
  %v37 = vld [vmem:[%s0 + $0x48] sm:$0xf]
  %v38 = vld [vmem:[%s0 + $0x4c] sm:$0xf]
  %v39 = vld [vmem:[%s0 + $0x50] sm:$0xf]
  %v40 = vld [vmem:[%s0 + $0x54] sm:$0xf]
  %v41 = vld [vmem:[%s0 + $0x58] sm:$0xf]
  %v42 = vld [vmem:[%s0 + $0x5c] sm:$0xf]
  %v43 = vld [vmem:[%s0 + $0x60] sm:$0xf]
  %v44 = vld [vmem:[%s0 + $0x64] sm:$0xf]
  %v45 = vld [vmem:[%s0 + $0x68] sm:$0xf]
  %v46 = vld [vmem:[%s0 + $0x6c] sm:$0xf]
  %v47 = vld [vmem:[%s0 + $0x70] sm:$0xf]
  %v48 = vld [vmem:[%s0 + $0x74] sm:$0xf]
  %v49 = vld [vmem:[%s0 + $0x78] sm:$0xf]
  %v50 = vld [vmem:[%s0 + $0x7c] sm:$0xf]
  %v51 = vld [vmem:[%s0 + $0x80] sm:$0xf]
  %v52 = vld [vmem:[%s0 + $0x84] sm:$0xf]
  %v53 = vld [vmem:[%s0 + $0x88] sm:$0xf]
  %v54 = vld [vmem:[%s0 + $0x8c] sm:$0xf]
  %v55 = vld [vmem:[%s0 + $0x90] sm:$0xf]
  %v56 = vld [vmem:[%s0 + $0x94] sm:$0xf]
  %v57 = vld [vmem:[%s0 + $0x98] sm:$0xf]
  %v58 = vld [vmem:[%s0 + $0x9c] sm:$0xf]
  %v59 = vld [vmem:[%s0 + $0xa0] sm:$0xf]
  %v60 = vld [vmem:[%s0 + $0xa4] sm:$0xf]
  %v61 = vld [vmem:[%s0 + $0xa8] sm:$0xf]
  %v62 = vld [vmem:[%s0 + $0xac] sm:$0xf]
  %v63 = vld [vmem:[%s0 + $0xb0] sm:$0xf]
  %v64 = vld [vmem:[%s0 + $0xb4] sm:$0xf]
  %v65 = vld [vmem:[%s0 + $0xb8] sm:$0xf]
  %v66 = vld [vmem:[%s0 + $0xbc] sm:$0xf]
  %v67 = vld [vmem:[%s0 + $0xc0] sm:$0xf]
  %v68 = vld [vmem:[%s0 + $0xc4] sm:$0xf]
  %v69 = vld [vmem:[%s0 + $0xc8] sm:$0xf]
  %v70 = vld [vmem:[%s0 + $0xcc] sm:$0xf]
  %v71 = vld [vmem:[%s0 + $0xd0] sm:$0xf]
  %v72 = vld [vmem:[%s0 + $0xd4] sm:$0xf]
  %v73 = vld [vmem:[%s0 + $0xd8] sm:$0xf]
  %v74 = vld [vmem:[%s0 + $0xdc] sm:$0xf]
  %v75 = vld [vmem:[%s0 + $0xe0] sm:$0xf]
  %v76 = vld [vmem:[%s0 + $0xe4] sm:$0xf]
  %v77 = vld [vmem:[%s0 + $0xe8] sm:$0xf]
  %v78 = vld [vmem:[%s0 + $0xec] sm:$0xf]
  %v79 = vld [vmem:[%s0 + $0xf0] sm:$0xf]
  %v80 = vld [vmem:[%s0 + $0xf4] sm:$0xf]
  %v81 = vld [vmem:[%s0 + $0xf8] sm:$0xf]
  %v82 = vld [vmem:[%s0 + $0xfc] sm:$0xf]
  %v83 = vld [vmem:[%s1] sm:$0xf]
  %v84 = vld [vmem:[%s1 + $0x4] sm:$0xf]
  %v85 = vld [vmem:[%s1 + $0x8] sm:$0xf]
  %v86 = vld [vmem:[%s1 + $0xc] sm:$0xf]
  %v87 = vld [vmem:[%s1 + $0x10] sm:$0xf]
  %v88 = vld [vmem:[%s1 + $0x14] sm:$0xf]
  %v89 = vld [vmem:[%s1 + $0x18] sm:$0xf]
  %v90 = vld [vmem:[%s1 + $0x1c] sm:$0xf]
  %v91 = vld [vmem:[%s1 + $0x20] sm:$0xf]
  %v92 = vld [vmem:[%s1 + $0x24] sm:$0xf]
  %v93 = vld [vmem:[%s1 + $0x28] sm:$0xf]
  %v94 = vld [vmem:[%s1 + $0x2c] sm:$0xf]
  %v95 = vld [vmem:[%s1 + $0x30] sm:$0xf]
  %v96 = vld [vmem:[%s1 + $0x34] sm:$0xf]
  %v97 = vld [vmem:[%s1 + $0x38] sm:$0xf]
  %v98 = vld [vmem:[%s1 + $0x3c] sm:$0xf]
  %v163 = vunpack.c.l.b16 %v19
  %v164 = vunpack.c.l.b16 %v20
  %v165 = vunpack.c.l.b16 %v21
  %v166 = vunpack.c.l.b16 %v22
  %v167 = vunpack.c.l.b16 %v23
  %v168 = vunpack.c.l.b16 %v24
  %v169 = vunpack.c.l.b16 %v25
  %v170 = vunpack.c.l.b16 %v26
  %v171 = vunpack.c.l.b16 %v27
  %v172 = vunpack.c.l.b16 %v28
  %v173 = vunpack.c.l.b16 %v29
  %v174 = vunpack.c.l.b16 %v30
  %v175 = vunpack.c.l.b16 %v31
  %v176 = vunpack.c.l.b16 %v32
  %v177 = vunpack.c.l.b16 %v33
  %v178 = vunpack.c.l.b16 %v34
  %v179 = vunpack.c.l.b16 %v35
  %v180 = vunpack.c.l.b16 %v36
  %v181 = vunpack.c.l.b16 %v37
  %v182 = vunpack.c.l.b16 %v38
  %v183 = vunpack.c.l.b16 %v39
  %v184 = vunpack.c.l.b16 %v40
  %v185 = vunpack.c.l.b16 %v41
  %v186 = vunpack.c.l.b16 %v42
  %v187 = vunpack.c.l.b16 %v43
  %v188 = vunpack.c.l.b16 %v44
  %v189 = vunpack.c.l.b16 %v45
  %v190 = vunpack.c.l.b16 %v46
  %v191 = vunpack.c.l.b16 %v47
  %v192 = vunpack.c.l.b16 %v48
  %v193 = vunpack.c.l.b16 %v49
  %v194 = vunpack.c.l.b16 %v50
  %v195 = vunpack.c.l.b16 %v51
  %v196 = vunpack.c.l.b16 %v52
  %v197 = vunpack.c.l.b16 %v53
  %v198 = vunpack.c.l.b16 %v54
  %v199 = vunpack.c.l.b16 %v55
  %v200 = vunpack.c.l.b16 %v56
  %v201 = vunpack.c.l.b16 %v57
  %v202 = vunpack.c.l.b16 %v58
  %v203 = vunpack.c.l.b16 %v59
  %v204 = vunpack.c.l.b16 %v60
  %v205 = vunpack.c.l.b16 %v61
  %v206 = vunpack.c.l.b16 %v62
  %v207 = vunpack.c.l.b16 %v63
  %v208 = vunpack.c.l.b16 %v64
  %v209 = vunpack.c.l.b16 %v65
  %v210 = vunpack.c.l.b16 %v66
  %v211 = vunpack.c.l.b16 %v67
  %v212 = vunpack.c.l.b16 %v68
  %v213 = vunpack.c.l.b16 %v69
  %v214 = vunpack.c.l.b16 %v70
  %v215 = vunpack.c.l.b16 %v71
  %v216 = vunpack.c.l.b16 %v72
  %v217 = vunpack.c.l.b16 %v73
  %v218 = vunpack.c.l.b16 %v74
  %v219 = vunpack.c.l.b16 %v75
  %v220 = vunpack.c.l.b16 %v76
  %v221 = vunpack.c.l.b16 %v77
  %v222 = vunpack.c.l.b16 %v78
  %v223 = vunpack.c.l.b16 %v79
  %v224 = vunpack.c.l.b16 %v80
  %v225 = vunpack.c.l.b16 %v81
  %v226 = vunpack.c.l.b16 %v82
  %v227 = vpack.c.b16 %v164, %v163
  %v228 = vpack.c.b16 %v166, %v165
  %v229 = vpack.c.b16 %v168, %v167
  %v230 = vpack.c.b16 %v170, %v169
  %v231 = vpack.c.b16 %v172, %v171
  %v232 = vpack.c.b16 %v174, %v173
  %v233 = vpack.c.b16 %v176, %v175
  %v234 = vpack.c.b16 %v178, %v177
  %v235 = vpack.c.b16 %v180, %v179
  %v236 = vpack.c.b16 %v182, %v181
  %v237 = vpack.c.b16 %v184, %v183
  %v238 = vpack.c.b16 %v186, %v185
  %v239 = vpack.c.b16 %v188, %v187
  %v240 = vpack.c.b16 %v190, %v189
  %v241 = vpack.c.b16 %v192, %v191
  %v242 = vpack.c.b16 %v194, %v193
  %v243 = vpack.c.b16 %v196, %v195
  %v244 = vpack.c.b16 %v198, %v197
  %v245 = vpack.c.b16 %v200, %v199
  %v246 = vpack.c.b16 %v202, %v201
  %v247 = vpack.c.b16 %v204, %v203
  %v248 = vpack.c.b16 %v206, %v205
  %v249 = vpack.c.b16 %v208, %v207
  %v250 = vpack.c.b16 %v210, %v209
  %v251 = vpack.c.b16 %v212, %v211
  %v252 = vpack.c.b16 %v214, %v213
  %v253 = vpack.c.b16 %v216, %v215
  %v254 = vpack.c.b16 %v218, %v217
  %v255 = vpack.c.b16 %v220, %v219
  %v256 = vpack.c.b16 %v222, %v221
  %v257 = vpack.c.b16 %v224, %v223
  %v258 = vpack.c.b16 %v226, %v225
  %v307 = vunpack.c.l.b16 %v83
  %v308 = vunpack.c.l.b16 %v84
  %v309 = vunpack.c.l.b16 %v85
  %v310 = vunpack.c.l.b16 %v86
  %v311 = vunpack.c.l.b16 %v87
  %v312 = vunpack.c.l.b16 %v88
  %v313 = vunpack.c.l.b16 %v89
  %v314 = vunpack.c.l.b16 %v90
  %v315 = vunpack.c.l.b16 %v91
  %v316 = vunpack.c.l.b16 %v92
  %v317 = vunpack.c.l.b16 %v93
  %v318 = vunpack.c.l.b16 %v94
  %v319 = vunpack.c.l.b16 %v95
  %v320 = vunpack.c.l.b16 %v96
  %v321 = vunpack.c.l.b16 %v97
  %v322 = vunpack.c.l.b16 %v98
  %v323 = vpack.c.b16 %v308, %v307
  %v324 = vpack.c.b16 %v310, %v309
  %v325 = vpack.c.b16 %v312, %v311
  %v326 = vpack.c.b16 %v314, %v313
  %v327 = vpack.c.b16 %v316, %v315
  %v328 = vpack.c.b16 %v318, %v317
  %v329 = vpack.c.b16 %v320, %v319
  %v330 = vpack.c.b16 %v322, %v321
  %339 = vmatprep.subr.bf16.mxu0 0
  %340 = vmatpush1.bf16.msra.mxu0 %v323
  %341 = vmatprep.subr.bf16.mxu0 0
  %342 = vmatpush1.bf16.msra.mxu0 %v324
  %343 = vmatprep.subr.bf16.mxu0 0
  %344 = vmatpush1.bf16.msra.mxu0 %v325
  %345 = vmatprep.subr.bf16.mxu0 0
  %346 = vmatpush1.bf16.msra.mxu0 %v326
  %347 = vmatprep.subr.bf16.mxu0 0
  %348 = vmatpush1.bf16.msra.mxu0 %v327
  %349 = vmatprep.subr.bf16.mxu0 0
  %350 = vmatpush1.bf16.msra.mxu0 %v328
  %351 = vmatprep.subr.bf16.mxu0 0
  %352 = vmatpush1.bf16.msra.mxu0 %v329
  %353 = vmatprep.subr.bf16.mxu0 0
  %354 = vmatpush1.bf16.msra.mxu0 %v330
  %355 = vmatprep.subr.bf16.mxu0 0
  %356 = vmatpush1.bf16.msra.mxu0 0
  %357 = vmatprep.subr.bf16.mxu0 0
  %358 = vmatpush1.bf16.msra.mxu0 0
  %359 = vmatprep.subr.bf16.mxu0 0
  %360 = vmatpush1.bf16.msra.mxu0 0
  %361 = vmatprep.subr.bf16.mxu0 0
  %362 = vmatpush1.bf16.msra.mxu0 0
  %363 = vmatprep.subr.bf16.mxu0 0
  %364 = vmatpush1.bf16.msra.mxu0 0
  %365 = vmatprep.subr.bf16.mxu0 0
  %366 = vmatpush1.bf16.msra.mxu0 0
  %367 = vmatprep.subr.bf16.mxu0 0
  %368 = vmatpush1.bf16.msra.mxu0 0
  %369 = vmatprep.subr.bf16.mxu0 0
  %370 = vmatpush1.bf16.msra.mxu0 0
  %371 = vmatprep.mubr.bf16.mxu0 0
  %372 = vmatmul.mubr.bf16.gmra.mrb[0].mxu0 %v227
  %v373 = vpop.f32.mrb[0].mxu0
  %v374 = vadd.f32 0.0, %v373
  %v375 = vpop.f32.mrb[0].mxu0
  %v376 = vpop.f32.mrb[0].mxu0
  %v377 = vadd.f32 0.0, %v376
  %v378 = vpop.f32.mrb[0].mxu0
  %379 = vmatprep.mubr.bf16.mxu0 0
  %380 = vmatmul.mubr.bf16.gmra.mrb[0].mxu0 %v228
  %v381 = vpop.f32.mrb[0].mxu0
  %v382 = vadd.f32 0.0, %v381
  %v383 = vpop.f32.mrb[0].mxu0
  %v384 = vpop.f32.mrb[0].mxu0
  %v385 = vadd.f32 0.0, %v384
  %v386 = vpop.f32.mrb[0].mxu0
  %387 = vmatprep.mubr.bf16.mxu0 0
  %388 = vmatmul.mubr.bf16.gmra.mrb[0].mxu0 %v229
  %v389 = vpop.f32.mrb[0].mxu0
  %v390 = vadd.f32 0.0, %v389
  %v391 = vpop.f32.mrb[0].mxu0
  %v392 = vpop.f32.mrb[0].mxu0
  %v393 = vadd.f32 0.0, %v392
  %v394 = vpop.f32.mrb[0].mxu0
  %395 = vmatprep.mubr.bf16.mxu0 0
  %396 = vmatmul.mubr.bf16.gmra.mrb[0].mxu0 %v230
  %v397 = vpop.f32.mrb[0].mxu0
  %v398 = vadd.f32 0.0, %v397
  %v399 = vpop.f32.mrb[0].mxu0
  %v400 = vpop.f32.mrb[0].mxu0
  %v401 = vadd.f32 0.0, %v400
  %v402 = vpop.f32.mrb[0].mxu0
  %403 = vmatprep.mubr.bf16.mxu0 0
  %404 = vmatmul.mubr.bf16.gmra.mrb[0].mxu0 %v231
  %v405 = vpop.f32.mrb[0].mxu0
  %v406 = vadd.f32 0.0, %v405
  %v407 = vpop.f32.mrb[0].mxu0
  %v408 = vpop.f32.mrb[0].mxu0
  %v409 = vadd.f32 0.0, %v408
  %v410 = vpop.f32.mrb[0].mxu0
  %411 = vmatprep.mubr.bf16.mxu0 0
  %412 = vmatmul.mubr.bf16.gmra.mrb[0].mxu0 %v232
  %v413 = vpop.f32.mrb[0].mxu0
  %v414 = vadd.f32 0.0, %v413
  %v415 = vpop.f32.mrb[0].mxu0
  %v416 = vpop.f32.mrb[0].mxu0
  %v417 = vadd.f32 0.0, %v416
  %v418 = vpop.f32.mrb[0].mxu0
  %419 = vmatprep.mubr.bf16.mxu0 0
  %420 = vmatmul.mubr.bf16.gmra.mrb[0].mxu0 %v233
  %v421 = vpop.f32.mrb[0].mxu0
  %v422 = vadd.f32 0.0, %v421
  %v423 = vpop.f32.mrb[0].mxu0
  %v424 = vpop.f32.mrb[0].mxu0
  %v425 = vadd.f32 0.0, %v424
  %v426 = vpop.f32.mrb[0].mxu0
  %427 = vmatprep.mubr.bf16.mxu0 0
  %428 = vmatmul.mubr.bf16.gmra.mrb[0].mxu0 %v234
  %v429 = vpop.f32.mrb[0].mxu0
  %v430 = vadd.f32 0.0, %v429
  %v431 = vpop.f32.mrb[0].mxu0
  %v432 = vpop.f32.mrb[0].mxu0
  %v433 = vadd.f32 0.0, %v432
  %v434 = vpop.f32.mrb[0].mxu0
  %435 = vmatprep.mubr.bf16.mxu0 0
  %436 = vmatmul.mubr.bf16.gmra.mrb[0].mxu0 %v235
  %v437 = vpop.f32.mrb[0].mxu0
  %v438 = vadd.f32 0.0, %v437
  %v439 = vpop.f32.mrb[0].mxu0
  %v440 = vpop.f32.mrb[0].mxu0
  %v441 = vadd.f32 0.0, %v440
  %v442 = vpop.f32.mrb[0].mxu0
  %443 = vmatprep.mubr.bf16.mxu0 0
  %444 = vmatmul.mubr.bf16.gmra.mrb[0].mxu0 %v236
  %v445 = vpop.f32.mrb[0].mxu0
  %v446 = vadd.f32 0.0, %v445
  %v447 = vpop.f32.mrb[0].mxu0
  %v448 = vpop.f32.mrb[0].mxu0
  %v449 = vadd.f32 0.0, %v448
  %v450 = vpop.f32.mrb[0].mxu0
  %451 = vmatprep.mubr.bf16.mxu0 0
  %452 = vmatmul.mubr.bf16.gmra.mrb[0].mxu0 %v237
  %v453 = vpop.f32.mrb[0].mxu0
  %v454 = vadd.f32 0.0, %v453
  %v455 = vpop.f32.mrb[0].mxu0
  %v456 = vpop.f32.mrb[0].mxu0
  %v457 = vadd.f32 0.0, %v456
  %v458 = vpop.f32.mrb[0].mxu0
  %459 = vmatprep.mubr.bf16.mxu0 0
  %460 = vmatmul.mubr.bf16.gmra.mrb[0].mxu0 %v238
  %v461 = vpop.f32.mrb[0].mxu0
  %v462 = vadd.f32 0.0, %v461
  %v463 = vpop.f32.mrb[0].mxu0
  %v464 = vpop.f32.mrb[0].mxu0
  %v465 = vadd.f32 0.0, %v464
  %v466 = vpop.f32.mrb[0].mxu0
  %467 = vmatprep.mubr.bf16.mxu0 0
  %468 = vmatmul.mubr.bf16.gmra.mrb[0].mxu0 %v239
  %v469 = vpop.f32.mrb[0].mxu0
  %v470 = vadd.f32 0.0, %v469
  %v471 = vpop.f32.mrb[0].mxu0
  %v472 = vpop.f32.mrb[0].mxu0
  %v473 = vadd.f32 0.0, %v472
  %v474 = vpop.f32.mrb[0].mxu0
  %475 = vmatprep.mubr.bf16.mxu0 0
  %476 = vmatmul.mubr.bf16.gmra.mrb[0].mxu0 %v240
  %v477 = vpop.f32.mrb[0].mxu0
  %v478 = vadd.f32 0.0, %v477
  %v479 = vpop.f32.mrb[0].mxu0
  %v480 = vpop.f32.mrb[0].mxu0
  %v481 = vadd.f32 0.0, %v480
  %v482 = vpop.f32.mrb[0].mxu0
  %483 = vmatprep.mubr.bf16.mxu0 0
  %484 = vmatmul.mubr.bf16.gmra.mrb[0].mxu0 %v241
  %v485 = vpop.f32.mrb[0].mxu0
  %v486 = vadd.f32 0.0, %v485
  %v487 = vpop.f32.mrb[0].mxu0
  %v488 = vpop.f32.mrb[0].mxu0
  %v489 = vadd.f32 0.0, %v488
  %v490 = vpop.f32.mrb[0].mxu0
  %491 = vmatprep.mubr.bf16.mxu0 0
  %492 = vmatmul.mubr.bf16.gmra.mrb[0].mxu0 %v242
  %v493 = vpop.f32.mrb[0].mxu0
  %v494 = vadd.f32 0.0, %v493
  %v495 = vpop.f32.mrb[0].mxu0
  %v496 = vpop.f32.mrb[0].mxu0
  %v497 = vadd.f32 0.0, %v496
  %v498 = vpop.f32.mrb[0].mxu0
  %499 = vmatprep.mubr.bf16.mxu0 0
  %500 = vmatmul.mubr.bf16.gmra.mrb[0].mxu0 %v243
  %v501 = vpop.f32.mrb[0].mxu0
  %v502 = vadd.f32 0.0, %v501
  %v503 = vpop.f32.mrb[0].mxu0
  %v504 = vpop.f32.mrb[0].mxu0
  %v505 = vadd.f32 0.0, %v504
  %v506 = vpop.f32.mrb[0].mxu0
  %507 = vmatprep.mubr.bf16.mxu0 0
  %508 = vmatmul.mubr.bf16.gmra.mrb[0].mxu0 %v244
  %v509 = vpop.f32.mrb[0].mxu0
  %v510 = vadd.f32 0.0, %v509
  %v511 = vpop.f32.mrb[0].mxu0
  %v512 = vpop.f32.mrb[0].mxu0
  %v513 = vadd.f32 0.0, %v512
  %v514 = vpop.f32.mrb[0].mxu0
  %515 = vmatprep.mubr.bf16.mxu0 0
  %516 = vmatmul.mubr.bf16.gmra.mrb[0].mxu0 %v245
  %v517 = vpop.f32.mrb[0].mxu0
  %v518 = vadd.f32 0.0, %v517
  %v519 = vpop.f32.mrb[0].mxu0
  %v520 = vpop.f32.mrb[0].mxu0
  %v521 = vadd.f32 0.0, %v520
  %v522 = vpop.f32.mrb[0].mxu0
  %523 = vmatprep.mubr.bf16.mxu0 0
  %524 = vmatmul.mubr.bf16.gmra.mrb[0].mxu0 %v246
  %v525 = vpop.f32.mrb[0].mxu0
  %v526 = vadd.f32 0.0, %v525
  %v527 = vpop.f32.mrb[0].mxu0
  %v528 = vpop.f32.mrb[0].mxu0
  %v529 = vadd.f32 0.0, %v528
  %v530 = vpop.f32.mrb[0].mxu0
  %531 = vmatprep.mubr.bf16.mxu0 0
  %532 = vmatmul.mubr.bf16.gmra.mrb[0].mxu0 %v247
  %v533 = vpop.f32.mrb[0].mxu0
  %v534 = vadd.f32 0.0, %v533
  %v535 = vpop.f32.mrb[0].mxu0
  %v536 = vpop.f32.mrb[0].mxu0
  %v537 = vadd.f32 0.0, %v536
  %v538 = vpop.f32.mrb[0].mxu0
  %539 = vmatprep.mubr.bf16.mxu0 0
  %540 = vmatmul.mubr.bf16.gmra.mrb[0].mxu0 %v248
  %v541 = vpop.f32.mrb[0].mxu0
  %v542 = vadd.f32 0.0, %v541
  %v543 = vpop.f32.mrb[0].mxu0
  %v544 = vpop.f32.mrb[0].mxu0
  %v545 = vadd.f32 0.0, %v544
  %v546 = vpop.f32.mrb[0].mxu0
  %547 = vmatprep.mubr.bf16.mxu0 0
  %548 = vmatmul.mubr.bf16.gmra.mrb[0].mxu0 %v249
  %v549 = vpop.f32.mrb[0].mxu0
  %v550 = vadd.f32 0.0, %v549
  %v551 = vpop.f32.mrb[0].mxu0
  %v552 = vpop.f32.mrb[0].mxu0
  %v553 = vadd.f32 0.0, %v552
  %v554 = vpop.f32.mrb[0].mxu0
  %555 = vmatprep.mubr.bf16.mxu0 0
  %556 = vmatmul.mubr.bf16.gmra.mrb[0].mxu0 %v250
  %v557 = vpop.f32.mrb[0].mxu0
  %v558 = vadd.f32 0.0, %v557
  %v559 = vpop.f32.mrb[0].mxu0
  %v560 = vpop.f32.mrb[0].mxu0
  %v561 = vadd.f32 0.0, %v560
  %v562 = vpop.f32.mrb[0].mxu0
  %563 = vmatprep.mubr.bf16.mxu0 0
  %564 = vmatmul.mubr.bf16.gmra.mrb[0].mxu0 %v251
  %v565 = vpop.f32.mrb[0].mxu0
  %v566 = vadd.f32 0.0, %v565
  %v567 = vpop.f32.mrb[0].mxu0
  %v568 = vpop.f32.mrb[0].mxu0
  %v569 = vadd.f32 0.0, %v568
  %v570 = vpop.f32.mrb[0].mxu0
  %571 = vmatprep.mubr.bf16.mxu0 0
  %572 = vmatmul.mubr.bf16.gmra.mrb[0].mxu0 %v252
  %v573 = vpop.f32.mrb[0].mxu0
  %v574 = vadd.f32 0.0, %v573
  %v575 = vpop.f32.mrb[0].mxu0
  %v576 = vpop.f32.mrb[0].mxu0
  %v577 = vadd.f32 0.0, %v576
  %v578 = vpop.f32.mrb[0].mxu0
  %579 = vmatprep.mubr.bf16.mxu0 0
  %580 = vmatmul.mubr.bf16.gmra.mrb[0].mxu0 %v253
  %v581 = vpop.f32.mrb[0].mxu0
  %v582 = vadd.f32 0.0, %v581
  %v583 = vpop.f32.mrb[0].mxu0
  %v584 = vpop.f32.mrb[0].mxu0
  %v585 = vadd.f32 0.0, %v584
  %v586 = vpop.f32.mrb[0].mxu0
  %587 = vmatprep.mubr.bf16.mxu0 0
  %588 = vmatmul.mubr.bf16.gmra.mrb[0].mxu0 %v254
  %v589 = vpop.f32.mrb[0].mxu0
  %v590 = vadd.f32 0.0, %v589
  %v591 = vpop.f32.mrb[0].mxu0
  %v592 = vpop.f32.mrb[0].mxu0
  %v593 = vadd.f32 0.0, %v592
  %v594 = vpop.f32.mrb[0].mxu0
  %595 = vmatprep.mubr.bf16.mxu0 0
  %596 = vmatmul.mubr.bf16.gmra.mrb[0].mxu0 %v255
  %v597 = vpop.f32.mrb[0].mxu0
  %v598 = vadd.f32 0.0, %v597
  %v599 = vpop.f32.mrb[0].mxu0
  %v600 = vpop.f32.mrb[0].mxu0
  %v601 = vadd.f32 0.0, %v600
  %v602 = vpop.f32.mrb[0].mxu0
  %603 = vmatprep.mubr.bf16.mxu0 0
  %604 = vmatmul.mubr.bf16.gmra.mrb[0].mxu0 %v256
  %v605 = vpop.f32.mrb[0].mxu0
  %v606 = vadd.f32 0.0, %v605
  %v607 = vpop.f32.mrb[0].mxu0
  %v608 = vpop.f32.mrb[0].mxu0
  %v609 = vadd.f32 0.0, %v608
  %v610 = vpop.f32.mrb[0].mxu0
  %611 = vmatprep.mubr.bf16.mxu0 0
  %612 = vmatmul.mubr.bf16.gmra.mrb[0].mxu0 %v257
  %v613 = vpop.f32.mrb[0].mxu0
  %v614 = vadd.f32 0.0, %v613
  %v615 = vpop.f32.mrb[0].mxu0
  %v616 = vpop.f32.mrb[0].mxu0
  %v617 = vadd.f32 0.0, %v616
  %v618 = vpop.f32.mrb[0].mxu0
  %619 = vmatprep.mubr.bf16.mxu0 0
  %620 = vmatmul.mubr.bf16.gmra.mrb[0].mxu0 %v258
  %v621 = vpop.f32.mrb[0].mxu0
  %v622 = vadd.f32 0.0, %v621
  %v623 = vpop.f32.mrb[0].mxu0
  %v624 = vpop.f32.mrb[0].mxu0
  %v625 = vadd.f32 0.0, %v624
  %v626 = vpop.f32.mrb[0].mxu0
  %627 = vdwg.mxu0
  %628 = vst [vmem:[%s2] sm:$0xff] %v374
  %629 = vst [vmem:[%s2 + $0x8] sm:$0xff] %v377
  %630 = vst [vmem:[%s2 + $0x10] sm:$0xff] %v382
  %631 = vst [vmem:[%s2 + $0x18] sm:$0xff] %v385
  %632 = vst [vmem:[%s2 + $0x20] sm:$0xff] %v390
  %633 = vst [vmem:[%s2 + $0x28] sm:$0xff] %v393
  %634 = vst [vmem:[%s2 + $0x30] sm:$0xff] %v398
  %635 = vst [vmem:[%s2 + $0x38] sm:$0xff] %v401
  %636 = vst [vmem:[%s2 + $0x40] sm:$0xff] %v406
  %637 = vst [vmem:[%s2 + $0x48] sm:$0xff] %v409
  %638 = vst [vmem:[%s2 + $0x50] sm:$0xff] %v414
  %639 = vst [vmem:[%s2 + $0x58] sm:$0xff] %v417
  %640 = vst [vmem:[%s2 + $0x60] sm:$0xff] %v422
  %641 = vst [vmem:[%s2 + $0x68] sm:$0xff] %v425
  %642 = vst [vmem:[%s2 + $0x70] sm:$0xff] %v430
  %643 = vst [vmem:[%s2 + $0x78] sm:$0xff] %v433
  %644 = vst [vmem:[%s2 + $0x80] sm:$0xff] %v438
  %645 = vst [vmem:[%s2 + $0x88] sm:$0xff] %v441
  %646 = vst [vmem:[%s2 + $0x90] sm:$0xff] %v446
  %647 = vst [vmem:[%s2 + $0x98] sm:$0xff] %v449
  %648 = vst [vmem:[%s2 + $0xa0] sm:$0xff] %v454
  %649 = vst [vmem:[%s2 + $0xa8] sm:$0xff] %v457
  %650 = vst [vmem:[%s2 + $0xb0] sm:$0xff] %v462
  %651 = vst [vmem:[%s2 + $0xb8] sm:$0xff] %v465
  %652 = vst [vmem:[%s2 + $0xc0] sm:$0xff] %v470
  %653 = vst [vmem:[%s2 + $0xc8] sm:$0xff] %v473
  %654 = vst [vmem:[%s2 + $0xd0] sm:$0xff] %v478
  %655 = vst [vmem:[%s2 + $0xd8] sm:$0xff] %v481
  %656 = vst [vmem:[%s2 + $0xe0] sm:$0xff] %v486
  %657 = vst [vmem:[%s2 + $0xe8] sm:$0xff] %v489
  %658 = vst [vmem:[%s2 + $0xf0] sm:$0xff] %v494
  %659 = vst [vmem:[%s2 + $0xf8] sm:$0xff] %v497
  %660 = vst [vmem:[%s2 + $0x100] sm:$0xff] %v502
  %661 = vst [vmem:[%s2 + $0x108] sm:$0xff] %v505
  %662 = vst [vmem:[%s2 + $0x110] sm:$0xff] %v510
  %663 = vst [vmem:[%s2 + $0x118] sm:$0xff] %v513
  %664 = vst [vmem:[%s2 + $0x120] sm:$0xff] %v518
  %665 = vst [vmem:[%s2 + $0x128] sm:$0xff] %v521
  %666 = vst [vmem:[%s2 + $0x130] sm:$0xff] %v526
  %667 = vst [vmem:[%s2 + $0x138] sm:$0xff] %v529
  %668 = vst [vmem:[%s2 + $0x140] sm:$0xff] %v534
  %669 = vst [vmem:[%s2 + $0x148] sm:$0xff] %v537
  %670 = vst [vmem:[%s2 + $0x150] sm:$0xff] %v542
  %671 = vst [vmem:[%s2 + $0x158] sm:$0xff] %v545
  %672 = vst [vmem:[%s2 + $0x160] sm:$0xff] %v550
  %673 = vst [vmem:[%s2 + $0x168] sm:$0xff] %v553
  %674 = vst [vmem:[%s2 + $0x170] sm:$0xff] %v558
  %675 = vst [vmem:[%s2 + $0x178] sm:$0xff] %v561
  %676 = vst [vmem:[%s2 + $0x180] sm:$0xff] %v566
  %677 = vst [vmem:[%s2 + $0x188] sm:$0xff] %v569
  %678 = vst [vmem:[%s2 + $0x190] sm:$0xff] %v574
  %679 = vst [vmem:[%s2 + $0x198] sm:$0xff] %v577
  %680 = vst [vmem:[%s2 + $0x1a0] sm:$0xff] %v582
  %681 = vst [vmem:[%s2 + $0x1a8] sm:$0xff] %v585
  %682 = vst [vmem:[%s2 + $0x1b0] sm:$0xff] %v590
  %683 = vst [vmem:[%s2 + $0x1b8] sm:$0xff] %v593
  %684 = vst [vmem:[%s2 + $0x1c0] sm:$0xff] %v598
  %685 = vst [vmem:[%s2 + $0x1c8] sm:$0xff] %v601
  %686 = vst [vmem:[%s2 + $0x1d0] sm:$0xff] %v606
  %687 = vst [vmem:[%s2 + $0x1d8] sm:$0xff] %v609
  %688 = vst [vmem:[%s2 + $0x1e0] sm:$0xff] %v614
  %689 = vst [vmem:[%s2 + $0x1e8] sm:$0xff] %v617
  %690 = vst [vmem:[%s2 + $0x1f0] sm:$0xff] %v622
  %691 = vst [vmem:[%s2 + $0x1f8] sm:$0xff] %v625
  %v692 = vld [vmem:[%s3] sm:$0x1]
  %v693 = vadd.f32 %v374, %v377
  %v694 = vadd.f32 %v693, %v382
  %v695 = vadd.f32 %v694, %v385
  %v696 = vadd.f32 %v695, %v390
  %v697 = vadd.f32 %v696, %v393
  %v698 = vadd.f32 %v697, %v398
  %v699 = vadd.f32 %v698, %v401
  %v700 = vadd.f32 %v699, %v406
  %v701 = vadd.f32 %v700, %v409
  %v702 = vadd.f32 %v701, %v414
  %v703 = vadd.f32 %v702, %v417
  %v704 = vadd.f32 %v703, %v422
  %v705 = vadd.f32 %v704, %v425
  %v706 = vadd.f32 %v705, %v430
  %v707 = vadd.f32 %v706, %v433
  %v708 = vadd.f32 %v707, %v438
  %v709 = vadd.f32 %v708, %v441
  %v710 = vadd.f32 %v709, %v446
  %v711 = vadd.f32 %v710, %v449
  %v712 = vadd.f32 %v711, %v454
  %v713 = vadd.f32 %v712, %v457
  %v714 = vadd.f32 %v713, %v462
  %v715 = vadd.f32 %v714, %v465
  %v716 = vadd.f32 %v715, %v470
  %v717 = vadd.f32 %v716, %v473
  %v718 = vadd.f32 %v717, %v478
  %v719 = vadd.f32 %v718, %v481
  %v720 = vadd.f32 %v719, %v486
  %v721 = vadd.f32 %v720, %v489
  %v722 = vadd.f32 %v721, %v494
  %v723 = vadd.f32 %v722, %v497
  %v724 = vadd.f32 %v723, %v502
  %v725 = vadd.f32 %v724, %v505
  %v726 = vadd.f32 %v725, %v510
  %v727 = vadd.f32 %v726, %v513
  %v728 = vadd.f32 %v727, %v518
  %v729 = vadd.f32 %v728, %v521
  %v730 = vadd.f32 %v729, %v526
  %v731 = vadd.f32 %v730, %v529
  %v732 = vadd.f32 %v731, %v534
  %v733 = vadd.f32 %v732, %v537
  %v734 = vadd.f32 %v733, %v542
  %v735 = vadd.f32 %v734, %v545
  %v736 = vadd.f32 %v735, %v550
  %v737 = vadd.f32 %v736, %v553
  %v738 = vadd.f32 %v737, %v558
  %v739 = vadd.f32 %v738, %v561
  %v740 = vadd.f32 %v739, %v566
  %v741 = vadd.f32 %v740, %v569
  %v742 = vadd.f32 %v741, %v574
  %v743 = vadd.f32 %v742, %v577
  %v744 = vadd.f32 %v743, %v582
  %v745 = vadd.f32 %v744, %v585
  %v746 = vadd.f32 %v745, %v590
  %v747 = vadd.f32 %v746, %v593
  %v748 = vadd.f32 %v747, %v598
  %v749 = vadd.f32 %v748, %v601
  %v750 = vadd.f32 %v749, %v606
  %v751 = vadd.f32 %v750, %v609
  %v752 = vadd.f32 %v751, %v614
  %v753 = vadd.f32 %v752, %v617
  %v754 = vadd.f32 %v753, %v622
  %v755 = vadd.f32 %v754, %v625
  %v756 = vrot.slane %v755, 4
  %v757 = vadd.f32 %v755, %v756
  %v758 = vrot.slane %v757, 2
  %v759 = vadd.f32 %v757, %v758
  %v760 = vrot.slane %v759, 1
  %v761 = vadd.f32 %v759, %v760
  %v762 = vadd.f32 %v692, %v761
  %763 = vst [vmem:[%s3] sm:$0x1] %v762
  %v764 = vld [vmem:[%s3 + $0x1] sm:$0x1]
  %v765 = vmul.f32 %v374, %v374
  %v766 = vmul.f32 %v377, %v377
  %v767 = vmul.f32 %v382, %v382
  %v768 = vmul.f32 %v385, %v385
  %v769 = vmul.f32 %v390, %v390
  %v770 = vmul.f32 %v393, %v393
  %v771 = vmul.f32 %v398, %v398
  %v772 = vmul.f32 %v401, %v401
  %v773 = vmul.f32 %v406, %v406
  %v774 = vmul.f32 %v409, %v409
  %v775 = vmul.f32 %v414, %v414
  %v776 = vmul.f32 %v417, %v417
  %v777 = vmul.f32 %v422, %v422
  %v778 = vmul.f32 %v425, %v425
  %v779 = vmul.f32 %v430, %v430
  %v780 = vmul.f32 %v433, %v433
  %v781 = vmul.f32 %v438, %v438
  %v782 = vmul.f32 %v441, %v441
  %v783 = vmul.f32 %v446, %v446
  %v784 = vmul.f32 %v449, %v449
  %v785 = vmul.f32 %v454, %v454
  %v786 = vmul.f32 %v457, %v457
  %v787 = vmul.f32 %v462, %v462
  %v788 = vmul.f32 %v465, %v465
  %v789 = vmul.f32 %v470, %v470
  %v790 = vmul.f32 %v473, %v473
  %v791 = vmul.f32 %v478, %v478
  %v792 = vmul.f32 %v481, %v481
  %v793 = vmul.f32 %v486, %v486
  %v794 = vmul.f32 %v489, %v489
  %v795 = vmul.f32 %v494, %v494
  %v796 = vmul.f32 %v497, %v497
  %v797 = vmul.f32 %v502, %v502
  %v798 = vmul.f32 %v505, %v505
  %v799 = vmul.f32 %v510, %v510
  %v800 = vmul.f32 %v513, %v513
  %v801 = vmul.f32 %v518, %v518
  %v802 = vmul.f32 %v521, %v521
  %v803 = vmul.f32 %v526, %v526
  %v804 = vmul.f32 %v529, %v529
  %v805 = vmul.f32 %v534, %v534
  %v806 = vmul.f32 %v537, %v537
  %v807 = vmul.f32 %v542, %v542
  %v808 = vmul.f32 %v545, %v545
  %v809 = vmul.f32 %v550, %v550
  %v810 = vmul.f32 %v553, %v553
  %v811 = vmul.f32 %v558, %v558
  %v812 = vmul.f32 %v561, %v561
  %v813 = vmul.f32 %v566, %v566
  %v814 = vmul.f32 %v569, %v569
  %v815 = vmul.f32 %v574, %v574
  %v816 = vmul.f32 %v577, %v577
  %v817 = vmul.f32 %v582, %v582
  %v818 = vmul.f32 %v585, %v585
  %v819 = vmul.f32 %v590, %v590
  %v820 = vmul.f32 %v593, %v593
  %v821 = vmul.f32 %v598, %v598
  %v822 = vmul.f32 %v601, %v601
  %v823 = vmul.f32 %v606, %v606
  %v824 = vmul.f32 %v609, %v609
  %v825 = vmul.f32 %v614, %v614
  %v826 = vmul.f32 %v617, %v617
  %v827 = vmul.f32 %v622, %v622
  %v828 = vmul.f32 %v625, %v625
  %v829 = vadd.f32 %v765, %v766
  %v830 = vadd.f32 %v829, %v767
  %v831 = vadd.f32 %v830, %v768
  %v832 = vadd.f32 %v831, %v769
  %v833 = vadd.f32 %v832, %v770
  %v834 = vadd.f32 %v833, %v771
  %v835 = vadd.f32 %v834, %v772
  %v836 = vadd.f32 %v835, %v773
  %v837 = vadd.f32 %v836, %v774
  %v838 = vadd.f32 %v837, %v775
  %v839 = vadd.f32 %v838, %v776
  %v840 = vadd.f32 %v839, %v777
  %v841 = vadd.f32 %v840, %v778
  %v842 = vadd.f32 %v841, %v779
  %v843 = vadd.f32 %v842, %v780
  %v844 = vadd.f32 %v843, %v781
  %v845 = vadd.f32 %v844, %v782
  %v846 = vadd.f32 %v845, %v783
  %v847 = vadd.f32 %v846, %v784
  %v848 = vadd.f32 %v847, %v785
  %v849 = vadd.f32 %v848, %v786
  %v850 = vadd.f32 %v849, %v787
  %v851 = vadd.f32 %v850, %v788
  %v852 = vadd.f32 %v851, %v789
  %v853 = vadd.f32 %v852, %v790
  %v854 = vadd.f32 %v853, %v791
  %v855 = vadd.f32 %v854, %v792
  %v856 = vadd.f32 %v855, %v793
  %v857 = vadd.f32 %v856, %v794
  %v858 = vadd.f32 %v857, %v795
  %v859 = vadd.f32 %v858, %v796
  %v860 = vadd.f32 %v859, %v797
  %v861 = vadd.f32 %v860, %v798
  %v862 = vadd.f32 %v861, %v799
  %v863 = vadd.f32 %v862, %v800
  %v864 = vadd.f32 %v863, %v801
  %v865 = vadd.f32 %v864, %v802
  %v866 = vadd.f32 %v865, %v803
  %v867 = vadd.f32 %v866, %v804
  %v868 = vadd.f32 %v867, %v805
  %v869 = vadd.f32 %v868, %v806
  %v870 = vadd.f32 %v869, %v807
  %v871 = vadd.f32 %v870, %v808
  %v872 = vadd.f32 %v871, %v809
  %v873 = vadd.f32 %v872, %v810
  %v874 = vadd.f32 %v873, %v811
  %v875 = vadd.f32 %v874, %v812
  %v876 = vadd.f32 %v875, %v813
  %v877 = vadd.f32 %v876, %v814
  %v878 = vadd.f32 %v877, %v815
  %v879 = vadd.f32 %v878, %v816
  %v880 = vadd.f32 %v879, %v817
  %v881 = vadd.f32 %v880, %v818
  %v882 = vadd.f32 %v881, %v819
  %v883 = vadd.f32 %v882, %v820
  %v884 = vadd.f32 %v883, %v821
  %v885 = vadd.f32 %v884, %v822
  %v886 = vadd.f32 %v885, %v823
  %v887 = vadd.f32 %v886, %v824
  %v888 = vadd.f32 %v887, %v825
  %v889 = vadd.f32 %v888, %v826
  %v890 = vadd.f32 %v889, %v827
  %v891 = vadd.f32 %v890, %v828
  %v892 = vrot.slane %v891, 4
  %v893 = vadd.f32 %v891, %v892
  %v894 = vrot.slane %v893, 2
  %v895 = vadd.f32 %v893, %v894
  %v896 = vrot.slane %v895, 1
  %v897 = vadd.f32 %v895, %v896
  %v898 = vadd.f32 %v764, %v897
  %899 = vst [vmem:[%s3 + $0x1] sm:$0x1] %v898
  // Predicated region
  $region14: #{cnn_block_forward.2} parent=0 // pred_check
    _
  $region15: #{cnn_block_forward.2} parent=0 // pred_check_branch
    %901 = sbr.rel (0) target = $region17
  $region16: #{cnn_block_forward.2} parent=0 // pred_region
    _
  $region17: #{cnn_block_forward.2} parent=0 // pred_fallthru
    _
  // Predicated region
  $region18: #{cnn_block_forward.2} parent=0 // pred_check
    _
  $region19: #{cnn_block_forward.2} parent=0 // pred_check_branch
    %903 = sbr.rel (0) target = $region21
  $region20: #{cnn_block_forward.2} parent=0 // pred_region
    _
  $region21: #{cnn_block_forward.2} parent=0 // pred_fallthru
    _
  // Predicated region
  $region22: #{cnn_block_forward.2} parent=0 // pred_check
    _
  $region23: #{cnn_block_forward.2} parent=0 // pred_check_branch
    %905 = sbr.rel (0) target = $region25
  $region24: #{cnn_block_forward.2} parent=0 // pred_region
    _
  $region25: #{cnn_block_forward.2} parent=0 // pred_fallthru
    _
  // Predicated region
  $region26: #{cnn_block_forward.2} parent=0 // pred_check
    _
  $region27: #{cnn_block_forward.2} parent=0 // pred_check_branch
    %907 = sbr.rel (0) target = $region29
  $region28: #{cnn_block_forward.2} parent=0 // pred_region
    _
  $region29: #{cnn_block_forward.2} parent=0 // pred_fallthru
    _

</llo_original>
